<compile_context>
chip_gen: v5e
topology: v5e:2x2
jax: 0.10.0
libtpu: 0.0.40
codegen_flags: <defaults>
</compile_context>

<pallas_src>
import functools

import jax
import jax.numpy as jnp
from jax import lax
from jax.experimental import pallas as pl
from jax.experimental.pallas import tpu as pltpu

MM_DTYPE = jnp.bfloat16   # matmul-operand dtype (f32 accumulate); bf16 MXU on v5e/v6e/v7x


def _round_up(x, m):
    return ((x + m - 1) // m) * m


# --------------------------------------------------------------------------------------
# Fused kernel factory: num_lstm LSTM layers + Dense + Softmax in one pallas_call.
# --------------------------------------------------------------------------------------
def _make_forward_kernel(*, T, B, Hp, num_lstm, unroll):
    def kernel(*refs):
        x_ref = refs[0]                                  # (T, B, F)   matmul dtype
        pos = 1
        layer_refs = []
        for _ in range(num_lstm):
            layer_refs.append(refs[pos:pos + 3])         # (wih, whh, b) per layer
            pos += 3
        wd_ref, bd_ref = refs[pos], refs[pos + 1]        # (Hp, O), (1, O)
        pos += 2
        out_ref = refs[pos]                              # (B, O)
        pos += 1
        gx_scr = refs[pos]                               # (T, B, 4*Hp) f32 scratch
        pos += 1
        hseq_scr = refs[pos] if num_lstm > 1 else None   # (T, B, Hp)  f32 scratch

        h_last = None
        for l, (wih_ref, whh_ref, b_ref) in enumerate(layer_refs):
            wih = wih_ref[...]          # (F or Hp, 4*Hp)  matmul dtype
            whh = whh_ref[...]          # (Hp, 4*Hp)       matmul dtype
            b = b_ref[...]              # (1, 4*Hp)        f32
            mm_dtype = wih.dtype

            # 1) Hoisted input projection for ALL time steps (independent of h -> off the
            #    serial chain).  Leading-axis indexing keeps every access tile-aligned.
            def proj_body(t, carry, _l=l, _wih=wih, _b=b, _mm=mm_dtype):
                if _l == 0:
                    src = x_ref[t]                            # (B, F)
                else:
                    src = hseq_scr[t].astype(_mm)             # (B, Hp)
                gx_scr[t] = jnp.dot(src, _wih,
                                    preferred_element_type=jnp.float32) + _b
                return carry

            lax.fori_loop(0, T, proj_body, 0, unroll=unroll)

            # 2) Serial recurrence: only h @ W_hh on the critical path.
            write_seq = l < num_lstm - 1

            def step_body(t, carry, _whh=whh, _mm=mm_dtype, _write=write_seq):
                h, c = carry
                gates = gx_scr[t] + jnp.dot(h.astype(_mm), _whh,
                                            preferred_element_type=jnp.float32)
                # Lane-tile-aligned gate slices (each block is Hp = multiple of 128 lanes).
                i_g = jax.nn.sigmoid(gates[:, 0 * Hp:1 * Hp])
                f_g = jax.nn.sigmoid(gates[:, 1 * Hp:2 * Hp])
                g_g = jnp.tanh(gates[:, 2 * Hp:3 * Hp])
                o_g = jax.nn.sigmoid(gates[:, 3 * Hp:4 * Hp])
                c_new = f_g * c + i_g * g_g
                h_new = o_g * jnp.tanh(c_new)
                if _write:
                    hseq_scr[t] = h_new                       # stays in VMEM for next layer
                return (h_new, c_new)

            h0 = jnp.zeros((B, Hp), jnp.float32)
            c0 = jnp.zeros((B, Hp), jnp.float32)
            h_last, _ = lax.fori_loop(0, T, step_body, (h0, c0), unroll=unroll)

        # Dense on final hidden state, then exact Softmax over dim=1.
        logits = jnp.dot(h_last.astype(wd_ref.dtype), wd_ref[...],
                         preferred_element_type=jnp.float32) + bd_ref[...]
        m = jnp.max(logits, axis=1, keepdims=True)
        e = jnp.exp(logits - m)
        out_ref[...] = e / jnp.sum(e, axis=1, keepdims=True)

    return kernel


# --------------------------------------------------------------------------------------
# Wrapper: one fused pallas_call for the whole forward pass.
# --------------------------------------------------------------------------------------
@jax.jit
def model_forward(x_btf, packed):
    """x_btf: (B, T, F) batch-first (what the PyTorch module receives). Returns (B, O) probs."""
    B, T, _F = x_btf.shape
    lstm_ws = packed["lstm"]
    w_d, b_d = packed["dense"]
    num_lstm = len(lstm_ws)
    Hp = lstm_ws[0][1].shape[0]          # padded hidden width (multiple of 128)
    O = w_d.shape[1]
    unroll = min(T, 8)

    # batch.permute(1, 0, 2): time-major view fed to the kernel; cast matmul operand dtype.
    x_tbf = jnp.transpose(x_btf, (1, 0, 2)).astype(w_d.dtype)

    inputs = [x_tbf]
    for wih, whh, b in lstm_ws:
        inputs.extend([wih, whh, b])
    inputs.extend([w_d, b_d])

    scratch = [pltpu.VMEM((T, B, 4 * Hp), jnp.float32)]       # hoisted gate projections
    if num_lstm > 1:
        scratch.append(pltpu.VMEM((T, B, Hp), jnp.float32))   # inter-layer hidden sequence

    kernel = _make_forward_kernel(T=T, B=B, Hp=Hp, num_lstm=num_lstm, unroll=unroll)
    return pl.pallas_call(
        kernel,
        out_shape=jax.ShapeDtypeStruct((B, O), jnp.float32),
        in_specs=[pl.BlockSpec(memory_space=pltpu.MemorySpace.VMEM) for _ in inputs],
        out_specs=pl.BlockSpec(memory_space=pltpu.MemorySpace.VMEM),
        scratch_shapes=scratch,
    )(*inputs)


# --------------------------------------------------------------------------------------
# Parameter init (logical layout) and packing to the lane-aligned kernel layout.
# --------------------------------------------------------------------------------------
def init_params(key, feat, hidden, out, num_lstm=1):
    """Logical params: W_ih (in, 4H), W_hh (H, 4H), b (1, 4H)=b_ih+b_hh, W_d (H, O), b_d (1, O)."""
    params = {"lstm": [], "dense": None}
    for i in range(num_lstm):
        k1, k2, k3, key = jax.random.split(key, 4)
        in_dim = feat if i == 0 else hidden
        w_ih = jax.random.normal(k1, (in_dim, 4 * hidden), jnp.float32) * 0.2
        w_hh = jax.random.normal(k2, (hidden, 4 * hidden), jnp.float32) * 0.2
        b = jax.random.normal(k3, (1, 4 * hidden), jnp.float32) * 0.1
        params["lstm"].append((w_ih, w_hh, b))
    k1, k2, key = jax.random.split(key, 3)
    w_d = jax.random.normal(k1, (hidden, out), jnp.float32) * 0.2
    b_d = jax.random.normal(k2, (1, out), jnp.float32) * 0.1
    params["dense"] = (w_d, b_d)
    return params


def pack_params(params, *, mm_dtype=MM_DTYPE):
    """Pad each gate block to Hp=round_up(H,128) lanes, pad hidden rows to Hp, cast matmul
    weights to `mm_dtype` (biases stay f32). Padded rows/cols are zero -> padded lanes of
    h/c stay exactly 0 through the recurrence."""
    H = params["lstm"][0][1].shape[0]
    Hp = _round_up(H, 128)

    def pad_gate_cols(w):            # (r, 4H) -> (r, 4*Hp), gate g placed at g*Hp
        return jnp.concatenate(
            [jnp.pad(w[:, g * H:(g + 1) * H], ((0, 0), (0, Hp - H))) for g in range(4)],
            axis=1)

    def pad_rows(w):                 # (H, c) -> (Hp, c)
        return jnp.pad(w, ((0, Hp - H), (0, 0)))

    packed = {"lstm": [], "dense": None}
    for l, (w_ih, w_hh, b) in enumerate(params["lstm"]):
        w_ih_src = w_ih if l == 0 else pad_rows(w_ih)     # layer>0 input is (B, Hp)
        packed["lstm"].append((
            pad_gate_cols(w_ih_src).astype(mm_dtype),
            pad_gate_cols(pad_rows(w_hh)).astype(mm_dtype),
            pad_gate_cols(b).astype(jnp.float32),
        ))
    w_d, b_d = params["dense"]
    packed["dense"] = (pad_rows(w_d).astype(mm_dtype), b_d.astype(jnp.float32))
    return packed


# --------------------------------------------------------------------------------------
# Pure-JAX reference (same math, same matmul-operand rounding) for correctness check.
# --------------------------------------------------------------------------------------
def reference_forward(x_btf, params, num_lstm, mm_dtype=MM_DTYPE):
    B, T, _F = x_btf.shape

    def mm(a, w):
        return jnp.dot(a.astype(mm_dtype), w.astype(mm_dtype),
                       preferred_element_type=jnp.float32)

    seq = jnp.transpose(x_btf, (1, 0, 2))                 # (T, B, F)
    for l in range(num_lstm):
        w_ih, w_hh, b = params["lstm"][l]
        H = w_hh.shape[0]
        h = jnp.zeros((B, H), jnp.float32)
        c = jnp.zeros((B, H), jnp.float32)
        outs = []
        for t in range(T):
            gates = mm(seq[t], w_ih) + mm(h, w_hh) + b
            i_g = jax.nn.sigmoid(gates[:, 0 * H:1 * H])
            f_g = jax.nn.sigmoid(gates[:, 1 * H:2 * H])
            g_g = jnp.tanh(gates[:, 2 * H:3 * H])
            o_g = jax.nn.sigmoid(gates[:, 3 * H:4 * H])
            c = f_g * c + i_g * g_g
            h = o_g * jnp.tanh(c)
            outs.append(h)
        seq = jnp.stack(outs, axis=0)
    w_d, b_d = params["dense"]
    logits = mm(seq[-1], w_d) + b_d
    return jax.nn.softmax(logits, axis=1)


if __name__ == "__main__":
    B, T, F = 2, 8, 4        # batch, sequence length, feat_size
    HIDDEN = 8               # one of the module's size_hidden = [4, 8, 12]
    OUT = 3                  # output_size (number of classes)

    key = jax.random.PRNGKey(0)
    kx, kp = jax.random.split(key)
    x = jax.random.normal(kx, (B, T, F), jnp.float32)    # (B, T, F) batch-first

    for num_lstm in (1, 2):                              # default config + stacked variant
        params = init_params(kp, F, HIDDEN, OUT, num_lstm=num_lstm)
        packed = pack_params(params)
        probs = jax.block_until_ready(model_forward(x, packed))
        ref = reference_forward(x, params, num_lstm=num_lstm)

        assert probs.shape == (B, OUT)
        assert bool(jnp.all(jnp.abs(jnp.sum(probs, axis=1) - 1.0) < 1e-4)), "softmax not normalized"
        assert bool(jnp.max(jnp.abs(probs - ref)) < 5e-3), (probs, ref)

    print("KERNEL_OK")
</pallas_src>

<mosaic_0001>
module attributes {stable_mosaic.version = 11 : i64} {
  func.func @kernel(%arg0: memref<8x2x4xbf16, #tpu.memory_space<vmem>>, %arg1: memref<4x512xbf16, #tpu.memory_space<vmem>>, %arg2: memref<128x512xbf16, #tpu.memory_space<vmem>>, %arg3: memref<1x512xf32, #tpu.memory_space<vmem>>, %arg4: memref<128x3xbf16, #tpu.memory_space<vmem>>, %arg5: memref<1x3xf32, #tpu.memory_space<vmem>>, %arg6: memref<2x3xf32, #tpu.memory_space<vmem>>, %arg7: memref<8x2x512xf32, #tpu.memory_space<vmem>>) attributes {dimension_semantics = [], scalar_prefetch = 0 : i64, scratch_operands = 1 : i64, tpu.core_type = #tpu.core_type<tc>} {
    %c0 = arith.constant 0 : index
    %c0_0 = arith.constant 0 : index
    %0 = vector.load %arg1[%c0, %c0_0] : memref<4x512xbf16, #tpu.memory_space<vmem>>, vector<4x512xbf16>
    %c0_1 = arith.constant 0 : index
    %c0_2 = arith.constant 0 : index
    %1 = vector.load %arg2[%c0_1, %c0_2] : memref<128x512xbf16, #tpu.memory_space<vmem>>, vector<128x512xbf16>
    %c0_3 = arith.constant 0 : index
    %c0_4 = arith.constant 0 : index
    %2 = vector.load %arg3[%c0_3, %c0_4] : memref<1x512xf32, #tpu.memory_space<vmem>>, vector<1x512xf32>
    %c0_i32 = arith.constant 0 : i32
    %3 = arith.index_cast %c0_i32 : i32 to index
    %c0_5 = arith.constant 0 : index
    %c0_6 = arith.constant 0 : index
    %4 = vector.load %arg0[%3, %c0_5, %c0_6] : memref<8x2x4xbf16, #tpu.memory_space<vmem>>, vector<1x2x4xbf16>
    %5 = vector.shape_cast %4 : vector<1x2x4xbf16> to vector<2x4xbf16>
    %cst = arith.constant dense<0.000000e+00> : vector<2x512xf32>
    %6 = tpu.matmul %5, %0, %cst {dimension_numbers = #tpu.dot_dimension_numbers<[1], [0], [0], [1], [0, 0, 1, 1], [], []>} : vector<2x4xbf16>, vector<4x512xbf16>, vector<2x512xf32> -> vector<2x512xf32>
    %7 = vector.broadcast %2 : vector<1x512xf32> to vector<2x512xf32>
    %8 = arith.addf %6, %7 : vector<2x512xf32>
    %9 = arith.index_cast %c0_i32 : i32 to index
    %c0_7 = arith.constant 0 : index
    %c0_8 = arith.constant 0 : index
    %10 = vector.load %arg7[%9, %c0_7, %c0_8] : memref<8x2x512xf32, #tpu.memory_space<vmem>>, vector<1x2x512xf32>
    %11 = vector.shape_cast %10 : vector<1x2x512xf32> to vector<2x512xf32>
    %12 = vector.shape_cast %8 : vector<2x512xf32> to vector<1x2x512xf32>
    tpu.vector_store %arg7[%9, %c0_7, %c0_8], %12 {strides = array<i32>} : memref<8x2x512xf32, #tpu.memory_space<vmem>>, vector<1x2x512xf32>,
    %c1_i32 = arith.constant 1 : i32
    %13 = arith.index_cast %c1_i32 : i32 to index
    %c0_9 = arith.constant 0 : index
    %c0_10 = arith.constant 0 : index
    %14 = vector.load %arg0[%13, %c0_9, %c0_10] : memref<8x2x4xbf16, #tpu.memory_space<vmem>>, vector<1x2x4xbf16>
    %15 = vector.shape_cast %14 : vector<1x2x4xbf16> to vector<2x4xbf16>
    %cst_11 = arith.constant dense<0.000000e+00> : vector<2x512xf32>
    %16 = tpu.matmul %15, %0, %cst_11 {dimension_numbers = #tpu.dot_dimension_numbers<[1], [0], [0], [1], [0, 0, 1, 1], [], []>} : vector<2x4xbf16>, vector<4x512xbf16>, vector<2x512xf32> -> vector<2x512xf32>
    %17 = vector.broadcast %2 : vector<1x512xf32> to vector<2x512xf32>
    %18 = arith.addf %16, %17 : vector<2x512xf32>
    %19 = arith.index_cast %c1_i32 : i32 to index
    %c0_12 = arith.constant 0 : index
    %c0_13 = arith.constant 0 : index
    %20 = vector.load %arg7[%19, %c0_12, %c0_13] : memref<8x2x512xf32, #tpu.memory_space<vmem>>, vector<1x2x512xf32>
    %21 = vector.shape_cast %20 : vector<1x2x512xf32> to vector<2x512xf32>
    %22 = vector.shape_cast %18 : vector<2x512xf32> to vector<1x2x512xf32>
    tpu.vector_store %arg7[%19, %c0_12, %c0_13], %22 {strides = array<i32>} : memref<8x2x512xf32, #tpu.memory_space<vmem>>, vector<1x2x512xf32>,
    %c2_i32 = arith.constant 2 : i32
    %23 = arith.index_cast %c2_i32 : i32 to index
    %c0_14 = arith.constant 0 : index
    %c0_15 = arith.constant 0 : index
    %24 = vector.load %arg0[%23, %c0_14, %c0_15] : memref<8x2x4xbf16, #tpu.memory_space<vmem>>, vector<1x2x4xbf16>
    %25 = vector.shape_cast %24 : vector<1x2x4xbf16> to vector<2x4xbf16>
    %cst_16 = arith.constant dense<0.000000e+00> : vector<2x512xf32>
    %26 = tpu.matmul %25, %0, %cst_16 {dimension_numbers = #tpu.dot_dimension_numbers<[1], [0], [0], [1], [0, 0, 1, 1], [], []>} : vector<2x4xbf16>, vector<4x512xbf16>, vector<2x512xf32> -> vector<2x512xf32>
    %27 = vector.broadcast %2 : vector<1x512xf32> to vector<2x512xf32>
    %28 = arith.addf %26, %27 : vector<2x512xf32>
    %29 = arith.index_cast %c2_i32 : i32 to index
    %c0_17 = arith.constant 0 : index
    %c0_18 = arith.constant 0 : index
    %30 = vector.load %arg7[%29, %c0_17, %c0_18] : memref<8x2x512xf32, #tpu.memory_space<vmem>>, vector<1x2x512xf32>
    %31 = vector.shape_cast %30 : vector<1x2x512xf32> to vector<2x512xf32>
    %32 = vector.shape_cast %28 : vector<2x512xf32> to vector<1x2x512xf32>
    tpu.vector_store %arg7[%29, %c0_17, %c0_18], %32 {strides = array<i32>} : memref<8x2x512xf32, #tpu.memory_space<vmem>>, vector<1x2x512xf32>,
    %c3_i32 = arith.constant 3 : i32
    %33 = arith.index_cast %c3_i32 : i32 to index
    %c0_19 = arith.constant 0 : index
    %c0_20 = arith.constant 0 : index
    %34 = vector.load %arg0[%33, %c0_19, %c0_20] : memref<8x2x4xbf16, #tpu.memory_space<vmem>>, vector<1x2x4xbf16>
    %35 = vector.shape_cast %34 : vector<1x2x4xbf16> to vector<2x4xbf16>
    %cst_21 = arith.constant dense<0.000000e+00> : vector<2x512xf32>
    %36 = tpu.matmul %35, %0, %cst_21 {dimension_numbers = #tpu.dot_dimension_numbers<[1], [0], [0], [1], [0, 0, 1, 1], [], []>} : vector<2x4xbf16>, vector<4x512xbf16>, vector<2x512xf32> -> vector<2x512xf32>
    %37 = vector.broadcast %2 : vector<1x512xf32> to vector<2x512xf32>
    %38 = arith.addf %36, %37 : vector<2x512xf32>
    %39 = arith.index_cast %c3_i32 : i32 to index
    %c0_22 = arith.constant 0 : index
    %c0_23 = arith.constant 0 : index
    %40 = vector.load %arg7[%39, %c0_22, %c0_23] : memref<8x2x512xf32, #tpu.memory_space<vmem>>, vector<1x2x512xf32>
    %41 = vector.shape_cast %40 : vector<1x2x512xf32> to vector<2x512xf32>
    %42 = vector.shape_cast %38 : vector<2x512xf32> to vector<1x2x512xf32>
    tpu.vector_store %arg7[%39, %c0_22, %c0_23], %42 {strides = array<i32>} : memref<8x2x512xf32, #tpu.memory_space<vmem>>, vector<1x2x512xf32>,
    %c4_i32 = arith.constant 4 : i32
    %43 = arith.index_cast %c4_i32 : i32 to index
    %c0_24 = arith.constant 0 : index
    %c0_25 = arith.constant 0 : index
    %44 = vector.load %arg0[%43, %c0_24, %c0_25] : memref<8x2x4xbf16, #tpu.memory_space<vmem>>, vector<1x2x4xbf16>
    %45 = vector.shape_cast %44 : vector<1x2x4xbf16> to vector<2x4xbf16>
    %cst_26 = arith.constant dense<0.000000e+00> : vector<2x512xf32>
    %46 = tpu.matmul %45, %0, %cst_26 {dimension_numbers = #tpu.dot_dimension_numbers<[1], [0], [0], [1], [0, 0, 1, 1], [], []>} : vector<2x4xbf16>, vector<4x512xbf16>, vector<2x512xf32> -> vector<2x512xf32>
    %47 = vector.broadcast %2 : vector<1x512xf32> to vector<2x512xf32>
    %48 = arith.addf %46, %47 : vector<2x512xf32>
    %49 = arith.index_cast %c4_i32 : i32 to index
    %c0_27 = arith.constant 0 : index
    %c0_28 = arith.constant 0 : index
    %50 = vector.load %arg7[%49, %c0_27, %c0_28] : memref<8x2x512xf32, #tpu.memory_space<vmem>>, vector<1x2x512xf32>
    %51 = vector.shape_cast %50 : vector<1x2x512xf32> to vector<2x512xf32>
    %52 = vector.shape_cast %48 : vector<2x512xf32> to vector<1x2x512xf32>
    tpu.vector_store %arg7[%49, %c0_27, %c0_28], %52 {strides = array<i32>} : memref<8x2x512xf32, #tpu.memory_space<vmem>>, vector<1x2x512xf32>,
    %c5_i32 = arith.constant 5 : i32
    %53 = arith.index_cast %c5_i32 : i32 to index
    %c0_29 = arith.constant 0 : index
    %c0_30 = arith.constant 0 : index
    %54 = vector.load %arg0[%53, %c0_29, %c0_30] : memref<8x2x4xbf16, #tpu.memory_space<vmem>>, vector<1x2x4xbf16>
    %55 = vector.shape_cast %54 : vector<1x2x4xbf16> to vector<2x4xbf16>
    %cst_31 = arith.constant dense<0.000000e+00> : vector<2x512xf32>
    %56 = tpu.matmul %55, %0, %cst_31 {dimension_numbers = #tpu.dot_dimension_numbers<[1], [0], [0], [1], [0, 0, 1, 1], [], []>} : vector<2x4xbf16>, vector<4x512xbf16>, vector<2x512xf32> -> vector<2x512xf32>
    %57 = vector.broadcast %2 : vector<1x512xf32> to vector<2x512xf32>
    %58 = arith.addf %56, %57 : vector<2x512xf32>
    %59 = arith.index_cast %c5_i32 : i32 to index
    %c0_32 = arith.constant 0 : index
    %c0_33 = arith.constant 0 : index
    %60 = vector.load %arg7[%59, %c0_32, %c0_33] : memref<8x2x512xf32, #tpu.memory_space<vmem>>, vector<1x2x512xf32>
    %61 = vector.shape_cast %60 : vector<1x2x512xf32> to vector<2x512xf32>
    %62 = vector.shape_cast %58 : vector<2x512xf32> to vector<1x2x512xf32>
    tpu.vector_store %arg7[%59, %c0_32, %c0_33], %62 {strides = array<i32>} : memref<8x2x512xf32, #tpu.memory_space<vmem>>, vector<1x2x512xf32>,
    %c6_i32 = arith.constant 6 : i32
    %63 = arith.index_cast %c6_i32 : i32 to index
    %c0_34 = arith.constant 0 : index
    %c0_35 = arith.constant 0 : index
    %64 = vector.load %arg0[%63, %c0_34, %c0_35] : memref<8x2x4xbf16, #tpu.memory_space<vmem>>, vector<1x2x4xbf16>
    %65 = vector.shape_cast %64 : vector<1x2x4xbf16> to vector<2x4xbf16>
    %cst_36 = arith.constant dense<0.000000e+00> : vector<2x512xf32>
    %66 = tpu.matmul %65, %0, %cst_36 {dimension_numbers = #tpu.dot_dimension_numbers<[1], [0], [0], [1], [0, 0, 1, 1], [], []>} : vector<2x4xbf16>, vector<4x512xbf16>, vector<2x512xf32> -> vector<2x512xf32>
    %67 = vector.broadcast %2 : vector<1x512xf32> to vector<2x512xf32>
    %68 = arith.addf %66, %67 : vector<2x512xf32>
    %69 = arith.index_cast %c6_i32 : i32 to index
    %c0_37 = arith.constant 0 : index
    %c0_38 = arith.constant 0 : index
    %70 = vector.load %arg7[%69, %c0_37, %c0_38] : memref<8x2x512xf32, #tpu.memory_space<vmem>>, vector<1x2x512xf32>
    %71 = vector.shape_cast %70 : vector<1x2x512xf32> to vector<2x512xf32>
    %72 = vector.shape_cast %68 : vector<2x512xf32> to vector<1x2x512xf32>
    tpu.vector_store %arg7[%69, %c0_37, %c0_38], %72 {strides = array<i32>} : memref<8x2x512xf32, #tpu.memory_space<vmem>>, vector<1x2x512xf32>,
    %c7_i32 = arith.constant 7 : i32
    %73 = arith.index_cast %c7_i32 : i32 to index
    %c0_39 = arith.constant 0 : index
    %c0_40 = arith.constant 0 : index
    %74 = vector.load %arg0[%73, %c0_39, %c0_40] : memref<8x2x4xbf16, #tpu.memory_space<vmem>>, vector<1x2x4xbf16>
    %75 = vector.shape_cast %74 : vector<1x2x4xbf16> to vector<2x4xbf16>
    %cst_41 = arith.constant dense<0.000000e+00> : vector<2x512xf32>
    %76 = tpu.matmul %75, %0, %cst_41 {dimension_numbers = #tpu.dot_dimension_numbers<[1], [0], [0], [1], [0, 0, 1, 1], [], []>} : vector<2x4xbf16>, vector<4x512xbf16>, vector<2x512xf32> -> vector<2x512xf32>
    %77 = vector.broadcast %2 : vector<1x512xf32> to vector<2x512xf32>
    %78 = arith.addf %76, %77 : vector<2x512xf32>
    %79 = arith.index_cast %c7_i32 : i32 to index
    %c0_42 = arith.constant 0 : index
    %c0_43 = arith.constant 0 : index
    %80 = vector.load %arg7[%79, %c0_42, %c0_43] : memref<8x2x512xf32, #tpu.memory_space<vmem>>, vector<1x2x512xf32>
    %81 = vector.shape_cast %80 : vector<1x2x512xf32> to vector<2x512xf32>
    %82 = vector.shape_cast %78 : vector<2x512xf32> to vector<1x2x512xf32>
    tpu.vector_store %arg7[%79, %c0_42, %c0_43], %82 {strides = array<i32>} : memref<8x2x512xf32, #tpu.memory_space<vmem>>, vector<1x2x512xf32>,
    %c8_i32 = arith.constant 8 : i32
    %cst_44 = arith.constant 0.000000e+00 : f32
    %83 = vector.broadcast %cst_44 : f32 to vector<2x128xf32>
    %cst_45 = arith.constant 0.000000e+00 : f32
    %84 = vector.broadcast %cst_45 : f32 to vector<2x128xf32>
    %c0_i32_46 = arith.constant 0 : i32
    %85 = arith.index_cast %c0_i32_46 : i32 to index
    %c0_47 = arith.constant 0 : index
    %c0_48 = arith.constant 0 : index
    %86 = vector.load %arg7[%85, %c0_47, %c0_48] : memref<8x2x512xf32, #tpu.memory_space<vmem>>, vector<1x2x512xf32>
    %87 = vector.shape_cast %86 : vector<1x2x512xf32> to vector<2x512xf32>
    %88 = arith.truncf %83 : vector<2x128xf32> to vector<2x128xbf16>
    %cst_49 = arith.constant dense<0.000000e+00> : vector<2x512xf32>
    %89 = tpu.matmul %88, %1, %cst_49 {dimension_numbers = #tpu.dot_dimension_numbers<[1], [0], [0], [1], [0, 0, 1, 1], [], []>} : vector<2x128xbf16>, vector<128x512xbf16>, vector<2x512xf32> -> vector<2x512xf32>
    %90 = arith.addf %87, %89 : vector<2x512xf32>
    %91 = vector.extract_strided_slice %90 {offsets = [0, 0], sizes = [2, 128], strides = [1, 1]} : vector<2x512xf32> to vector<2x128xf32>
    %92 = arith.negf %91 : vector<2x128xf32>
    %93 = math.exp %92 : vector<2x128xf32>
    %cst_50 = arith.constant 1.000000e+00 : f32
    %94 = vector.broadcast %cst_50 : f32 to vector<2x128xf32>
    %95 = arith.addf %94, %93 : vector<2x128xf32>
    %96 = arith.divf %94, %95 : vector<2x128xf32>
    %97 = vector.extract_strided_slice %90 {offsets = [0, 128], sizes = [2, 128], strides = [1, 1]} : vector<2x512xf32> to vector<2x128xf32>
    %98 = arith.negf %97 : vector<2x128xf32>
    %99 = math.exp %98 : vector<2x128xf32>
    %cst_51 = arith.constant 1.000000e+00 : f32
    %100 = vector.broadcast %cst_51 : f32 to vector<2x128xf32>
    %101 = arith.addf %100, %99 : vector<2x128xf32>
    %102 = arith.divf %100, %101 : vector<2x128xf32>
    %103 = vector.extract_strided_slice %90 {offsets = [0, 256], sizes = [2, 128], strides = [1, 1]} : vector<2x512xf32> to vector<2x128xf32>
    %104 = math.tanh %103 : vector<2x128xf32>
    %105 = vector.extract_strided_slice %90 {offsets = [0, 384], sizes = [2, 128], strides = [1, 1]} : vector<2x512xf32> to vector<2x128xf32>
    %106 = arith.negf %105 : vector<2x128xf32>
    %107 = math.exp %106 : vector<2x128xf32>
    %cst_52 = arith.constant 1.000000e+00 : f32
    %108 = vector.broadcast %cst_52 : f32 to vector<2x128xf32>
    %109 = arith.addf %108, %107 : vector<2x128xf32>
    %110 = arith.divf %108, %109 : vector<2x128xf32>
    %111 = arith.mulf %102, %84 : vector<2x128xf32>
    %112 = arith.mulf %96, %104 : vector<2x128xf32>
    %113 = arith.addf %111, %112 : vector<2x128xf32>
    %114 = math.tanh %113 : vector<2x128xf32>
    %115 = arith.mulf %110, %114 : vector<2x128xf32>
    %c1_i32_53 = arith.constant 1 : i32
    %116 = arith.index_cast %c1_i32_53 : i32 to index
    %c0_54 = arith.constant 0 : index
    %c0_55 = arith.constant 0 : index
    %117 = vector.load %arg7[%116, %c0_54, %c0_55] : memref<8x2x512xf32, #tpu.memory_space<vmem>>, vector<1x2x512xf32>
    %118 = vector.shape_cast %117 : vector<1x2x512xf32> to vector<2x512xf32>
    %119 = arith.truncf %115 : vector<2x128xf32> to vector<2x128xbf16>
    %cst_56 = arith.constant dense<0.000000e+00> : vector<2x512xf32>
    %120 = tpu.matmul %119, %1, %cst_56 {dimension_numbers = #tpu.dot_dimension_numbers<[1], [0], [0], [1], [0, 0, 1, 1], [], []>} : vector<2x128xbf16>, vector<128x512xbf16>, vector<2x512xf32> -> vector<2x512xf32>
    %121 = arith.addf %118, %120 : vector<2x512xf32>
    %122 = vector.extract_strided_slice %121 {offsets = [0, 0], sizes = [2, 128], strides = [1, 1]} : vector<2x512xf32> to vector<2x128xf32>
    %123 = arith.negf %122 : vector<2x128xf32>
    %124 = math.exp %123 : vector<2x128xf32>
    %cst_57 = arith.constant 1.000000e+00 : f32
    %125 = vector.broadcast %cst_57 : f32 to vector<2x128xf32>
    %126 = arith.addf %125, %124 : vector<2x128xf32>
    %127 = arith.divf %125, %126 : vector<2x128xf32>
    %128 = vector.extract_strided_slice %121 {offsets = [0, 128], sizes = [2, 128], strides = [1, 1]} : vector<2x512xf32> to vector<2x128xf32>
    %129 = arith.negf %128 : vector<2x128xf32>
    %130 = math.exp %129 : vector<2x128xf32>
    %cst_58 = arith.constant 1.000000e+00 : f32
    %131 = vector.broadcast %cst_58 : f32 to vector<2x128xf32>
    %132 = arith.addf %131, %130 : vector<2x128xf32>
    %133 = arith.divf %131, %132 : vector<2x128xf32>
    %134 = vector.extract_strided_slice %121 {offsets = [0, 256], sizes = [2, 128], strides = [1, 1]} : vector<2x512xf32> to vector<2x128xf32>
    %135 = math.tanh %134 : vector<2x128xf32>
    %136 = vector.extract_strided_slice %121 {offsets = [0, 384], sizes = [2, 128], strides = [1, 1]} : vector<2x512xf32> to vector<2x128xf32>
    %137 = arith.negf %136 : vector<2x128xf32>
    %138 = math.exp %137 : vector<2x128xf32>
    %cst_59 = arith.constant 1.000000e+00 : f32
    %139 = vector.broadcast %cst_59 : f32 to vector<2x128xf32>
    %140 = arith.addf %139, %138 : vector<2x128xf32>
    %141 = arith.divf %139, %140 : vector<2x128xf32>
    %142 = arith.mulf %133, %113 : vector<2x128xf32>
    %143 = arith.mulf %127, %135 : vector<2x128xf32>
    %144 = arith.addf %142, %143 : vector<2x128xf32>
    %145 = math.tanh %144 : vector<2x128xf32>
    %146 = arith.mulf %141, %145 : vector<2x128xf32>
    %c2_i32_60 = arith.constant 2 : i32
    %147 = arith.index_cast %c2_i32_60 : i32 to index
    %c0_61 = arith.constant 0 : index
    %c0_62 = arith.constant 0 : index
    %148 = vector.load %arg7[%147, %c0_61, %c0_62] : memref<8x2x512xf32, #tpu.memory_space<vmem>>, vector<1x2x512xf32>
    %149 = vector.shape_cast %148 : vector<1x2x512xf32> to vector<2x512xf32>
    %150 = arith.truncf %146 : vector<2x128xf32> to vector<2x128xbf16>
    %cst_63 = arith.constant dense<0.000000e+00> : vector<2x512xf32>
    %151 = tpu.matmul %150, %1, %cst_63 {dimension_numbers = #tpu.dot_dimension_numbers<[1], [0], [0], [1], [0, 0, 1, 1], [], []>} : vector<2x128xbf16>, vector<128x512xbf16>, vector<2x512xf32> -> vector<2x512xf32>
    %152 = arith.addf %149, %151 : vector<2x512xf32>
    %153 = vector.extract_strided_slice %152 {offsets = [0, 0], sizes = [2, 128], strides = [1, 1]} : vector<2x512xf32> to vector<2x128xf32>
    %154 = arith.negf %153 : vector<2x128xf32>
    %155 = math.exp %154 : vector<2x128xf32>
    %cst_64 = arith.constant 1.000000e+00 : f32
    %156 = vector.broadcast %cst_64 : f32 to vector<2x128xf32>
    %157 = arith.addf %156, %155 : vector<2x128xf32>
    %158 = arith.divf %156, %157 : vector<2x128xf32>
    %159 = vector.extract_strided_slice %152 {offsets = [0, 128], sizes = [2, 128], strides = [1, 1]} : vector<2x512xf32> to vector<2x128xf32>
    %160 = arith.negf %159 : vector<2x128xf32>
    %161 = math.exp %160 : vector<2x128xf32>
    %cst_65 = arith.constant 1.000000e+00 : f32
    %162 = vector.broadcast %cst_65 : f32 to vector<2x128xf32>
    %163 = arith.addf %162, %161 : vector<2x128xf32>
    %164 = arith.divf %162, %163 : vector<2x128xf32>
    %165 = vector.extract_strided_slice %152 {offsets = [0, 256], sizes = [2, 128], strides = [1, 1]} : vector<2x512xf32> to vector<2x128xf32>
    %166 = math.tanh %165 : vector<2x128xf32>
    %167 = vector.extract_strided_slice %152 {offsets = [0, 384], sizes = [2, 128], strides = [1, 1]} : vector<2x512xf32> to vector<2x128xf32>
    %168 = arith.negf %167 : vector<2x128xf32>
    %169 = math.exp %168 : vector<2x128xf32>
    %cst_66 = arith.constant 1.000000e+00 : f32
    %170 = vector.broadcast %cst_66 : f32 to vector<2x128xf32>
    %171 = arith.addf %170, %169 : vector<2x128xf32>
    %172 = arith.divf %170, %171 : vector<2x128xf32>
    %173 = arith.mulf %164, %144 : vector<2x128xf32>
    %174 = arith.mulf %158, %166 : vector<2x128xf32>
    %175 = arith.addf %173, %174 : vector<2x128xf32>
    %176 = math.tanh %175 : vector<2x128xf32>
    %177 = arith.mulf %172, %176 : vector<2x128xf32>
    %c3_i32_67 = arith.constant 3 : i32
    %178 = arith.index_cast %c3_i32_67 : i32 to index
    %c0_68 = arith.constant 0 : index
    %c0_69 = arith.constant 0 : index
    %179 = vector.load %arg7[%178, %c0_68, %c0_69] : memref<8x2x512xf32, #tpu.memory_space<vmem>>, vector<1x2x512xf32>
    %180 = vector.shape_cast %179 : vector<1x2x512xf32> to vector<2x512xf32>
    %181 = arith.truncf %177 : vector<2x128xf32> to vector<2x128xbf16>
    %cst_70 = arith.constant dense<0.000000e+00> : vector<2x512xf32>
    %182 = tpu.matmul %181, %1, %cst_70 {dimension_numbers = #tpu.dot_dimension_numbers<[1], [0], [0], [1], [0, 0, 1, 1], [], []>} : vector<2x128xbf16>, vector<128x512xbf16>, vector<2x512xf32> -> vector<2x512xf32>
    %183 = arith.addf %180, %182 : vector<2x512xf32>
    %184 = vector.extract_strided_slice %183 {offsets = [0, 0], sizes = [2, 128], strides = [1, 1]} : vector<2x512xf32> to vector<2x128xf32>
    %185 = arith.negf %184 : vector<2x128xf32>
    %186 = math.exp %185 : vector<2x128xf32>
    %cst_71 = arith.constant 1.000000e+00 : f32
    %187 = vector.broadcast %cst_71 : f32 to vector<2x128xf32>
    %188 = arith.addf %187, %186 : vector<2x128xf32>
    %189 = arith.divf %187, %188 : vector<2x128xf32>
    %190 = vector.extract_strided_slice %183 {offsets = [0, 128], sizes = [2, 128], strides = [1, 1]} : vector<2x512xf32> to vector<2x128xf32>
    %191 = arith.negf %190 : vector<2x128xf32>
    %192 = math.exp %191 : vector<2x128xf32>
    %cst_72 = arith.constant 1.000000e+00 : f32
    %193 = vector.broadcast %cst_72 : f32 to vector<2x128xf32>
    %194 = arith.addf %193, %192 : vector<2x128xf32>
    %195 = arith.divf %193, %194 : vector<2x128xf32>
    %196 = vector.extract_strided_slice %183 {offsets = [0, 256], sizes = [2, 128], strides = [1, 1]} : vector<2x512xf32> to vector<2x128xf32>
    %197 = math.tanh %196 : vector<2x128xf32>
    %198 = vector.extract_strided_slice %183 {offsets = [0, 384], sizes = [2, 128], strides = [1, 1]} : vector<2x512xf32> to vector<2x128xf32>
    %199 = arith.negf %198 : vector<2x128xf32>
    %200 = math.exp %199 : vector<2x128xf32>
    %cst_73 = arith.constant 1.000000e+00 : f32
    %201 = vector.broadcast %cst_73 : f32 to vector<2x128xf32>
    %202 = arith.addf %201, %200 : vector<2x128xf32>
    %203 = arith.divf %201, %202 : vector<2x128xf32>
    %204 = arith.mulf %195, %175 : vector<2x128xf32>
    %205 = arith.mulf %189, %197 : vector<2x128xf32>
    %206 = arith.addf %204, %205 : vector<2x128xf32>
    %207 = math.tanh %206 : vector<2x128xf32>
    %208 = arith.mulf %203, %207 : vector<2x128xf32>
    %c4_i32_74 = arith.constant 4 : i32
    %209 = arith.index_cast %c4_i32_74 : i32 to index
    %c0_75 = arith.constant 0 : index
    %c0_76 = arith.constant 0 : index
    %210 = vector.load %arg7[%209, %c0_75, %c0_76] : memref<8x2x512xf32, #tpu.memory_space<vmem>>, vector<1x2x512xf32>
    %211 = vector.shape_cast %210 : vector<1x2x512xf32> to vector<2x512xf32>
    %212 = arith.truncf %208 : vector<2x128xf32> to vector<2x128xbf16>
    %cst_77 = arith.constant dense<0.000000e+00> : vector<2x512xf32>
    %213 = tpu.matmul %212, %1, %cst_77 {dimension_numbers = #tpu.dot_dimension_numbers<[1], [0], [0], [1], [0, 0, 1, 1], [], []>} : vector<2x128xbf16>, vector<128x512xbf16>, vector<2x512xf32> -> vector<2x512xf32>
    %214 = arith.addf %211, %213 : vector<2x512xf32>
    %215 = vector.extract_strided_slice %214 {offsets = [0, 0], sizes = [2, 128], strides = [1, 1]} : vector<2x512xf32> to vector<2x128xf32>
    %216 = arith.negf %215 : vector<2x128xf32>
    %217 = math.exp %216 : vector<2x128xf32>
    %cst_78 = arith.constant 1.000000e+00 : f32
    %218 = vector.broadcast %cst_78 : f32 to vector<2x128xf32>
    %219 = arith.addf %218, %217 : vector<2x128xf32>
    %220 = arith.divf %218, %219 : vector<2x128xf32>
    %221 = vector.extract_strided_slice %214 {offsets = [0, 128], sizes = [2, 128], strides = [1, 1]} : vector<2x512xf32> to vector<2x128xf32>
    %222 = arith.negf %221 : vector<2x128xf32>
    %223 = math.exp %222 : vector<2x128xf32>
    %cst_79 = arith.constant 1.000000e+00 : f32
    %224 = vector.broadcast %cst_79 : f32 to vector<2x128xf32>
    %225 = arith.addf %224, %223 : vector<2x128xf32>
    %226 = arith.divf %224, %225 : vector<2x128xf32>
    %227 = vector.extract_strided_slice %214 {offsets = [0, 256], sizes = [2, 128], strides = [1, 1]} : vector<2x512xf32> to vector<2x128xf32>
    %228 = math.tanh %227 : vector<2x128xf32>
    %229 = vector.extract_strided_slice %214 {offsets = [0, 384], sizes = [2, 128], strides = [1, 1]} : vector<2x512xf32> to vector<2x128xf32>
    %230 = arith.negf %229 : vector<2x128xf32>
    %231 = math.exp %230 : vector<2x128xf32>
    %cst_80 = arith.constant 1.000000e+00 : f32
    %232 = vector.broadcast %cst_80 : f32 to vector<2x128xf32>
    %233 = arith.addf %232, %231 : vector<2x128xf32>
    %234 = arith.divf %232, %233 : vector<2x128xf32>
    %235 = arith.mulf %226, %206 : vector<2x128xf32>
    %236 = arith.mulf %220, %228 : vector<2x128xf32>
    %237 = arith.addf %235, %236 : vector<2x128xf32>
    %238 = math.tanh %237 : vector<2x128xf32>
    %239 = arith.mulf %234, %238 : vector<2x128xf32>
    %c5_i32_81 = arith.constant 5 : i32
    %240 = arith.index_cast %c5_i32_81 : i32 to index
    %c0_82 = arith.constant 0 : index
    %c0_83 = arith.constant 0 : index
    %241 = vector.load %arg7[%240, %c0_82, %c0_83] : memref<8x2x512xf32, #tpu.memory_space<vmem>>, vector<1x2x512xf32>
    %242 = vector.shape_cast %241 : vector<1x2x512xf32> to vector<2x512xf32>
    %243 = arith.truncf %239 : vector<2x128xf32> to vector<2x128xbf16>
    %cst_84 = arith.constant dense<0.000000e+00> : vector<2x512xf32>
    %244 = tpu.matmul %243, %1, %cst_84 {dimension_numbers = #tpu.dot_dimension_numbers<[1], [0], [0], [1], [0, 0, 1, 1], [], []>} : vector<2x128xbf16>, vector<128x512xbf16>, vector<2x512xf32> -> vector<2x512xf32>
    %245 = arith.addf %242, %244 : vector<2x512xf32>
    %246 = vector.extract_strided_slice %245 {offsets = [0, 0], sizes = [2, 128], strides = [1, 1]} : vector<2x512xf32> to vector<2x128xf32>
    %247 = arith.negf %246 : vector<2x128xf32>
    %248 = math.exp %247 : vector<2x128xf32>
    %cst_85 = arith.constant 1.000000e+00 : f32
    %249 = vector.broadcast %cst_85 : f32 to vector<2x128xf32>
    %250 = arith.addf %249, %248 : vector<2x128xf32>
    %251 = arith.divf %249, %250 : vector<2x128xf32>
    %252 = vector.extract_strided_slice %245 {offsets = [0, 128], sizes = [2, 128], strides = [1, 1]} : vector<2x512xf32> to vector<2x128xf32>
    %253 = arith.negf %252 : vector<2x128xf32>
    %254 = math.exp %253 : vector<2x128xf32>
    %cst_86 = arith.constant 1.000000e+00 : f32
    %255 = vector.broadcast %cst_86 : f32 to vector<2x128xf32>
    %256 = arith.addf %255, %254 : vector<2x128xf32>
    %257 = arith.divf %255, %256 : vector<2x128xf32>
    %258 = vector.extract_strided_slice %245 {offsets = [0, 256], sizes = [2, 128], strides = [1, 1]} : vector<2x512xf32> to vector<2x128xf32>
    %259 = math.tanh %258 : vector<2x128xf32>
    %260 = vector.extract_strided_slice %245 {offsets = [0, 384], sizes = [2, 128], strides = [1, 1]} : vector<2x512xf32> to vector<2x128xf32>
    %261 = arith.negf %260 : vector<2x128xf32>
    %262 = math.exp %261 : vector<2x128xf32>
    %cst_87 = arith.constant 1.000000e+00 : f32
    %263 = vector.broadcast %cst_87 : f32 to vector<2x128xf32>
    %264 = arith.addf %263, %262 : vector<2x128xf32>
    %265 = arith.divf %263, %264 : vector<2x128xf32>
    %266 = arith.mulf %257, %237 : vector<2x128xf32>
    %267 = arith.mulf %251, %259 : vector<2x128xf32>
    %268 = arith.addf %266, %267 : vector<2x128xf32>
    %269 = math.tanh %268 : vector<2x128xf32>
    %270 = arith.mulf %265, %269 : vector<2x128xf32>
    %c6_i32_88 = arith.constant 6 : i32
    %271 = arith.index_cast %c6_i32_88 : i32 to index
    %c0_89 = arith.constant 0 : index
    %c0_90 = arith.constant 0 : index
    %272 = vector.load %arg7[%271, %c0_89, %c0_90] : memref<8x2x512xf32, #tpu.memory_space<vmem>>, vector<1x2x512xf32>
    %273 = vector.shape_cast %272 : vector<1x2x512xf32> to vector<2x512xf32>
    %274 = arith.truncf %270 : vector<2x128xf32> to vector<2x128xbf16>
    %cst_91 = arith.constant dense<0.000000e+00> : vector<2x512xf32>
    %275 = tpu.matmul %274, %1, %cst_91 {dimension_numbers = #tpu.dot_dimension_numbers<[1], [0], [0], [1], [0, 0, 1, 1], [], []>} : vector<2x128xbf16>, vector<128x512xbf16>, vector<2x512xf32> -> vector<2x512xf32>
    %276 = arith.addf %273, %275 : vector<2x512xf32>
    %277 = vector.extract_strided_slice %276 {offsets = [0, 0], sizes = [2, 128], strides = [1, 1]} : vector<2x512xf32> to vector<2x128xf32>
    %278 = arith.negf %277 : vector<2x128xf32>
    %279 = math.exp %278 : vector<2x128xf32>
    %cst_92 = arith.constant 1.000000e+00 : f32
    %280 = vector.broadcast %cst_92 : f32 to vector<2x128xf32>
    %281 = arith.addf %280, %279 : vector<2x128xf32>
    %282 = arith.divf %280, %281 : vector<2x128xf32>
    %283 = vector.extract_strided_slice %276 {offsets = [0, 128], sizes = [2, 128], strides = [1, 1]} : vector<2x512xf32> to vector<2x128xf32>
    %284 = arith.negf %283 : vector<2x128xf32>
    %285 = math.exp %284 : vector<2x128xf32>
    %cst_93 = arith.constant 1.000000e+00 : f32
    %286 = vector.broadcast %cst_93 : f32 to vector<2x128xf32>
    %287 = arith.addf %286, %285 : vector<2x128xf32>
    %288 = arith.divf %286, %287 : vector<2x128xf32>
    %289 = vector.extract_strided_slice %276 {offsets = [0, 256], sizes = [2, 128], strides = [1, 1]} : vector<2x512xf32> to vector<2x128xf32>
    %290 = math.tanh %289 : vector<2x128xf32>
    %291 = vector.extract_strided_slice %276 {offsets = [0, 384], sizes = [2, 128], strides = [1, 1]} : vector<2x512xf32> to vector<2x128xf32>
    %292 = arith.negf %291 : vector<2x128xf32>
    %293 = math.exp %292 : vector<2x128xf32>
    %cst_94 = arith.constant 1.000000e+00 : f32
    %294 = vector.broadcast %cst_94 : f32 to vector<2x128xf32>
    %295 = arith.addf %294, %293 : vector<2x128xf32>
    %296 = arith.divf %294, %295 : vector<2x128xf32>
    %297 = arith.mulf %288, %268 : vector<2x128xf32>
    %298 = arith.mulf %282, %290 : vector<2x128xf32>
    %299 = arith.addf %297, %298 : vector<2x128xf32>
    %300 = math.tanh %299 : vector<2x128xf32>
    %301 = arith.mulf %296, %300 : vector<2x128xf32>
    %c7_i32_95 = arith.constant 7 : i32
    %302 = arith.index_cast %c7_i32_95 : i32 to index
    %c0_96 = arith.constant 0 : index
    %c0_97 = arith.constant 0 : index
    %303 = vector.load %arg7[%302, %c0_96, %c0_97] : memref<8x2x512xf32, #tpu.memory_space<vmem>>, vector<1x2x512xf32>
    %304 = vector.shape_cast %303 : vector<1x2x512xf32> to vector<2x512xf32>
    %305 = arith.truncf %301 : vector<2x128xf32> to vector<2x128xbf16>
    %cst_98 = arith.constant dense<0.000000e+00> : vector<2x512xf32>
    %306 = tpu.matmul %305, %1, %cst_98 {dimension_numbers = #tpu.dot_dimension_numbers<[1], [0], [0], [1], [0, 0, 1, 1], [], []>} : vector<2x128xbf16>, vector<128x512xbf16>, vector<2x512xf32> -> vector<2x512xf32>
    %307 = arith.addf %304, %306 : vector<2x512xf32>
    %308 = vector.extract_strided_slice %307 {offsets = [0, 0], sizes = [2, 128], strides = [1, 1]} : vector<2x512xf32> to vector<2x128xf32>
    %309 = arith.negf %308 : vector<2x128xf32>
    %310 = math.exp %309 : vector<2x128xf32>
    %cst_99 = arith.constant 1.000000e+00 : f32
    %311 = vector.broadcast %cst_99 : f32 to vector<2x128xf32>
    %312 = arith.addf %311, %310 : vector<2x128xf32>
    %313 = arith.divf %311, %312 : vector<2x128xf32>
    %314 = vector.extract_strided_slice %307 {offsets = [0, 128], sizes = [2, 128], strides = [1, 1]} : vector<2x512xf32> to vector<2x128xf32>
    %315 = arith.negf %314 : vector<2x128xf32>
    %316 = math.exp %315 : vector<2x128xf32>
    %cst_100 = arith.constant 1.000000e+00 : f32
    %317 = vector.broadcast %cst_100 : f32 to vector<2x128xf32>
    %318 = arith.addf %317, %316 : vector<2x128xf32>
    %319 = arith.divf %317, %318 : vector<2x128xf32>
    %320 = vector.extract_strided_slice %307 {offsets = [0, 256], sizes = [2, 128], strides = [1, 1]} : vector<2x512xf32> to vector<2x128xf32>
    %321 = math.tanh %320 : vector<2x128xf32>
    %322 = vector.extract_strided_slice %307 {offsets = [0, 384], sizes = [2, 128], strides = [1, 1]} : vector<2x512xf32> to vector<2x128xf32>
    %323 = arith.negf %322 : vector<2x128xf32>
    %324 = math.exp %323 : vector<2x128xf32>
    %cst_101 = arith.constant 1.000000e+00 : f32
    %325 = vector.broadcast %cst_101 : f32 to vector<2x128xf32>
    %326 = arith.addf %325, %324 : vector<2x128xf32>
    %327 = arith.divf %325, %326 : vector<2x128xf32>
    %328 = arith.mulf %319, %299 : vector<2x128xf32>
    %329 = arith.mulf %313, %321 : vector<2x128xf32>
    %330 = arith.addf %328, %329 : vector<2x128xf32>
    %331 = math.tanh %330 : vector<2x128xf32>
    %332 = arith.mulf %327, %331 : vector<2x128xf32>
    %c8_i32_102 = arith.constant 8 : i32
    %333 = arith.truncf %332 : vector<2x128xf32> to vector<2x128xbf16>
    %c0_103 = arith.constant 0 : index
    %c0_104 = arith.constant 0 : index
    %334 = vector.load %arg4[%c0_103, %c0_104] : memref<128x3xbf16, #tpu.memory_space<vmem>>, vector<128x3xbf16>
    %cst_105 = arith.constant dense<0.000000e+00> : vector<2x3xf32>
    %335 = tpu.matmul %333, %334, %cst_105 {dimension_numbers = #tpu.dot_dimension_numbers<[1], [0], [0], [1], [0, 0, 1, 1], [], []>} : vector<2x128xbf16>, vector<128x3xbf16>, vector<2x3xf32> -> vector<2x3xf32>
    %c0_106 = arith.constant 0 : index
    %c0_107 = arith.constant 0 : index
    %336 = vector.load %arg5[%c0_106, %c0_107] : memref<1x3xf32, #tpu.memory_space<vmem>>, vector<1x3xf32>
    %337 = vector.broadcast %336 : vector<1x3xf32> to vector<2x3xf32>
    %338 = arith.addf %335, %337 : vector<2x3xf32>
    %cst_108 = arith.constant dense<0xFF800000> : vector<2xf32>
    %339 = vector.multi_reduction <maximumf>, %338, %cst_108 [1] : vector<2x3xf32> to vector<2xf32>
    %340 = vector.shape_cast %339 : vector<2xf32> to vector<2x1xf32>
    %341 = vector.broadcast %340 : vector<2x1xf32> to vector<2x3xf32>
    %342 = arith.subf %338, %341 : vector<2x3xf32>
    %343 = math.exp %342 : vector<2x3xf32>
    %cst_109 = arith.constant dense<0.000000e+00> : vector<2xf32>
    %344 = vector.multi_reduction <add>, %343, %cst_109 [1] : vector<2x3xf32> to vector<2xf32>
    %345 = vector.shape_cast %344 : vector<2xf32> to vector<2x1xf32>
    %346 = vector.broadcast %345 : vector<2x1xf32> to vector<2x3xf32>
    %347 = arith.divf %343, %346 : vector<2x3xf32>
    %c0_110 = arith.constant 0 : index
    %c0_111 = arith.constant 0 : index
    %348 = vector.load %arg6[%c0_110, %c0_111] : memref<2x3xf32, #tpu.memory_space<vmem>>, vector<2x3xf32>
    tpu.vector_store %arg6[%c0_110, %c0_111], %347 {strides = array<i32>} : memref<2x3xf32, #tpu.memory_space<vmem>>, vector<2x3xf32>,
    return
  }
}

</mosaic_0001>

<llo_original>
// kernel: model_forward.1
$region0: #{model_forward.1}
  #allocation0 [shape = 'u32[]', space=smem, size = 0x4, offset = 0x4, fixed_abs, tag = 'smem constant byte address 0x4 - core index']
  #allocation1 [shape = 'u32[72,128]{1,0:T(1,128)}', space=vmem, size = 0x9000, scoped, tag = 'internal scratch']
  #allocation2 [shape = 'f32[8,2,512]{2,1,0:T(2,128)}', space=vmem, size = 0x8000, scoped, tag = 'scratch operand']
  %s0 = inlined_call_operand.vmem [shape: bf16[8,2,4], index: 0, kind: input, shape index: {}]
  %s1 = inlined_call_operand.vmem [shape: bf16[4,512], index: 1, kind: input, shape index: {}]
  %s2 = inlined_call_operand.hbm [shape: bf16[128,512], index: 2, kind: input, shape index: {}]
  %s3 = inlined_call_operand.vmem [shape: f32[1,512], index: 3, kind: input, shape index: {}]
  %s4 = inlined_call_operand.vmem [shape: bf16[128,3], index: 4, kind: input, shape index: {}]
  %s5 = inlined_call_operand.vmem [shape: f32[1,3], index: 5, kind: input, shape index: {}]
  %s6 = inlined_call_operand.hbm [shape: f32[2,3], index: 6, kind: output, shape index: {}]
  %s7 = sld [smem:[#allocation0]]
  $region38: #{model_forward.1} parent=0
    _
  %s9 = ssub.s32 1, %s7
  %s10 = scalar_select 0, %s9, %s7
  $region1: #{model_forward.1} parent=0
    #allocation3 [shape = 'u8[131072]{0}', space=vmem, size = 0x20000, scoped, tag = 'input window, operand 2, single buffered']
    #allocation4 [shape = 's32[1]{0}', space=sflag, size = 0x4, scoped, tag = 'scoped memory for model_forward.1']
    #allocation5 [shape = 's32[1]{0}', space=sflag, size = 0x4, scoped, tag = 'scoped memory for model_forward.1']
    #allocation6 [shape = 'u8[1024]{0}', space=vmem, size = 0x400, scoped, tag = 'output window, operand 0, single buffered']
    %11 = vsyncpa [#allocation4], 0
    %12 = vsyncpa [#allocation5], 0
    // Predicated region
    $region2: #{model_forward.1} parent=1 // pred_check
      _
    $region3: #{model_forward.1} parent=1 // pred_check_branch
      %14 = sbr.rel (0) target = $region5
    $region4: #{model_forward.1} parent=1 // pred_region
      _
    $region5: #{model_forward.1} parent=1 // pred_fallthru
      _
    // Predicated region
    $region6: #{model_forward.1} parent=1 // pred_check
      _
    $region7: #{model_forward.1} parent=1 // pred_check_branch
      %16 = sbr.rel (0) target = $region9
    $region8: #{model_forward.1} parent=1 // pred_region
      _
    $region9: #{model_forward.1} parent=1 // pred_fallthru
      _
    // Predicated region
    $region10: #{model_forward.1} parent=1 // pred_check
      _
    $region11: #{model_forward.1} parent=1 // pred_check_branch
      %18 = sbr.rel (0) target = $region13
    $region12: #{model_forward.1} parent=1 // pred_region
      %20 = vsyncadd [#allocation4], 0
      %s21 = sshll.u32 %s2, 4
      %s22 = int_to_ptr.hbm [resolvable:$true] %s21
      %s23 = sshll.u32 [#allocation3], 4
      %s24 = int_to_ptr.vmem [resolvable:$true] %s23
      %29 = dma.hbm_to_vmem [thread:$0]  %s22, 4096, %s24, [#allocation4], 256, 256, 16
    $region13: #{model_forward.1} parent=1 // pred_fallthru
      _
    // Predicated region
    $region14: #{model_forward.1} parent=1 // pred_check
      _
    $region15: #{model_forward.1} parent=1 // pred_check_branch
      %31 = sbr.rel (0) target = $region17
    $region16: #{model_forward.1} parent=1 // pred_region
      _
    $region17: #{model_forward.1} parent=1 // pred_fallthru
      _
    // Predicated region
    $region18: #{model_forward.1} parent=1 // pred_check
      _
    $region19: #{model_forward.1} parent=1 // pred_check_branch
      %33 = sbr.rel (0) target = $region21
    $region20: #{model_forward.1} parent=1 // pred_region
      _
    $region21: #{model_forward.1} parent=1 // pred_fallthru
      _
    // Predicated region
    $region22: #{model_forward.1} parent=1 // pred_check
      _
    $region23: #{model_forward.1} parent=1 // pred_check_branch
      %35 = sbr.rel (0) target = $region25
    $region24: #{model_forward.1} parent=1 // pred_region
      _
    $region25: #{model_forward.1} parent=1 // pred_fallthru
      _
    // Predicated region
    $region26: #{model_forward.1} parent=1 // pred_check
      _
    $region27: #{model_forward.1} parent=1 // pred_check_branch
      %37 = sbr.rel (0) target = $region29
    $region28: #{model_forward.1} parent=1 // pred_region
      %39 = dma.done [#allocation4], 4096
    $region29: #{model_forward.1} parent=1 // pred_fallthru
      _
    %v41 = vld [vmem:[%s1] sm:$0xff]
    %v42 = vld [vmem:[#allocation3] sm:$0xff]
    %v43 = vld [vmem:[#allocation3 + $0x8] sm:$0xff]
    %v44 = vld [vmem:[#allocation3 + $0x10] sm:$0xff]
    %v45 = vld [vmem:[#allocation3 + $0x18] sm:$0xff]
    %v46 = vld [vmem:[#allocation3 + $0x20] sm:$0xff]
    %v47 = vld [vmem:[#allocation3 + $0x28] sm:$0xff]
    %v48 = vld [vmem:[#allocation3 + $0x30] sm:$0xff]
    %v49 = vld [vmem:[#allocation3 + $0x38] sm:$0xff]
    %v50 = vld [vmem:[#allocation3 + $0x40] sm:$0xff]
    %v51 = vld [vmem:[#allocation3 + $0x48] sm:$0xff]
    %v52 = vld [vmem:[#allocation3 + $0x50] sm:$0xff]
    %v53 = vld [vmem:[#allocation3 + $0x58] sm:$0xff]
    %v54 = vld [vmem:[#allocation3 + $0x60] sm:$0xff]
    %v55 = vld [vmem:[#allocation3 + $0x68] sm:$0xff]
    %v56 = vld [vmem:[#allocation3 + $0x70] sm:$0xff]
    %v57 = vld [vmem:[#allocation3 + $0x78] sm:$0xff]
    %v58 = vld [vmem:[#allocation3 + $0x80] sm:$0xff]
    %v59 = vld [vmem:[#allocation3 + $0x88] sm:$0xff]
    %v60 = vld [vmem:[#allocation3 + $0x90] sm:$0xff]
    %v61 = vld [vmem:[#allocation3 + $0x98] sm:$0xff]
    %v62 = vld [vmem:[#allocation3 + $0xa0] sm:$0xff]
    %v63 = vld [vmem:[#allocation3 + $0xa8] sm:$0xff]
    %v64 = vld [vmem:[#allocation3 + $0xb0] sm:$0xff]
    %v65 = vld [vmem:[#allocation3 + $0xb8] sm:$0xff]
    %v66 = vld [vmem:[#allocation3 + $0xc0] sm:$0xff]
    %v67 = vld [vmem:[#allocation3 + $0xc8] sm:$0xff]
    %v68 = vld [vmem:[#allocation3 + $0xd0] sm:$0xff]
    %v69 = vld [vmem:[#allocation3 + $0xd8] sm:$0xff]
    %v70 = vld [vmem:[#allocation3 + $0xe0] sm:$0xff]
    %v71 = vld [vmem:[#allocation3 + $0xe8] sm:$0xff]
    %v72 = vld [vmem:[#allocation3 + $0xf0] sm:$0xff]
    %v73 = vld [vmem:[#allocation3 + $0xf8] sm:$0xff]
    %v74 = vld [vmem:[%s3] sm:$0xf]
    %v75 = vld [vmem:[%s0] sm:$0x1]
    %v77 = vperm.slane %v74, 0
    %v78 = vperm.slane %v74, 1
    %v79 = vperm.slane %v74, 2
    %v80 = vperm.slane %v74, 3
    %86 = vst [vmem:[#allocation1] ss:$4 sm:$0xff] %v41
    %v87 = vld.sshfl [vmem:[#allocation1] sm:$0xff pattern:$0x73625140]
    %v88 = vld.sshfl [vmem:[#allocation1 + $0x8] sm:$0xff pattern:$0x73625140]
    %v89 = vld.sshfl [vmem:[#allocation1 + $0x10] sm:$0xff pattern:$0x73625140]
    %v90 = vld.sshfl [vmem:[#allocation1 + $0x18] sm:$0xff pattern:$0x73625140]
    %vm91 = vcmask 31744
    %v93 = vsel %vm91, %v75, 0
    %vm95 = vcmask 1041408
    %v96 = vsel %vm95, %v87, 0
    %v98 = vsel %vm95, %v88, 0
    %v100 = vsel %vm95, %v89, 0
    %v102 = vsel %vm95, %v90, 0
    %104 = vmatpush.bf16.msra.mxu0 0
    %105 = vmatpush.bf16.msra.mxu0 0
    %106 = vmatpush.bf16.msra.mxu0 0
    %107 = vmatpush.bf16.msra.mxu0 0
    %108 = vmatpush.bf16.msra.mxu0 0
    %109 = vmatpush.bf16.msra.mxu0 0
    %110 = vmatpush.bf16.msra.mxu0 0
    %111 = vmatpush.bf16.msra.mxu0 %v96
    %112 = vmatmul.bf16.gmra.mxu0 %v93
    %v113 = vpop.f32.mrf.mxu0
    %v114 = vadd.f32 %v77, %v113
    %v115 = vpop.f32.mrf.mxu0
    %116 = vdwg.mxu0
    %117 = vmatpush.bf16.msra.mxu0 0
    %118 = vmatpush.bf16.msra.mxu0 0
    %119 = vmatpush.bf16.msra.mxu0 0
    %120 = vmatpush.bf16.msra.mxu0 0
    %121 = vmatpush.bf16.msra.mxu0 0
    %122 = vmatpush.bf16.msra.mxu0 0
    %123 = vmatpush.bf16.msra.mxu0 0
    %124 = vmatpush.bf16.msra.mxu0 %v98
    %125 = vmatmul.bf16.gmra.mxu0 %v93
    %v126 = vpop.f32.mrf.mxu0
    %v127 = vadd.f32 %v78, %v126
    %v128 = vpop.f32.mrf.mxu0
    %129 = vdwg.mxu0
    %130 = vmatpush.bf16.msra.mxu0 0
    %131 = vmatpush.bf16.msra.mxu0 0
    %132 = vmatpush.bf16.msra.mxu0 0
    %133 = vmatpush.bf16.msra.mxu0 0
    %134 = vmatpush.bf16.msra.mxu0 0
    %135 = vmatpush.bf16.msra.mxu0 0
    %136 = vmatpush.bf16.msra.mxu0 0
    %137 = vmatpush.bf16.msra.mxu0 %v100
    %138 = vmatmul.bf16.gmra.mxu0 %v93
    %v139 = vpop.f32.mrf.mxu0
    %v140 = vadd.f32 %v79, %v139
    %v141 = vpop.f32.mrf.mxu0
    %142 = vdwg.mxu0
    %143 = vmatpush.bf16.msra.mxu0 0
    %144 = vmatpush.bf16.msra.mxu0 0
    %145 = vmatpush.bf16.msra.mxu0 0
    %146 = vmatpush.bf16.msra.mxu0 0
    %147 = vmatpush.bf16.msra.mxu0 0
    %148 = vmatpush.bf16.msra.mxu0 0
    %149 = vmatpush.bf16.msra.mxu0 0
    %150 = vmatpush.bf16.msra.mxu0 %v102
    %151 = vmatmul.bf16.gmra.mxu0 %v93
    %v152 = vpop.f32.mrf.mxu0
    %v153 = vadd.f32 %v80, %v152
    %v154 = vpop.f32.mrf.mxu0
    %155 = vdwg.mxu0
    %v160 = vrot.slane %v127, 6
    %v161 = vrot.slane %v140, 4
    %v162 = vrot.slane %v153, 2
    %v163 = vsel %vm95, %v114, %v160
    %vm164 = vcmask 1045508
    %v165 = vsel %vm164, %v161, %v162
    %vm166 = vcmask 1043456
    %v167 = vsel %vm166, %v163, %v165
    %169 = vst [vmem:[#allocation2] sm:$0xff] %v167
    %s170 = scalar_lea.vmem %s0, 1
    %v171 = vld [vmem:[%s170] sm:$0x1]
    %172 = vst [vmem:[#allocation1] ss:$4 sm:$0xff] %v41
    %v173 = vld.sshfl [vmem:[#allocation1] sm:$0xff pattern:$0x73625140]
    %v174 = vld.sshfl [vmem:[#allocation1 + $0x8] sm:$0xff pattern:$0x73625140]
    %v175 = vld.sshfl [vmem:[#allocation1 + $0x10] sm:$0xff pattern:$0x73625140]
    %v176 = vld.sshfl [vmem:[#allocation1 + $0x18] sm:$0xff pattern:$0x73625140]
    %v178 = vsel %vm91, %v171, 0
    %v180 = vsel %vm95, %v173, 0
    %v182 = vsel %vm95, %v174, 0
    %v184 = vsel %vm95, %v175, 0
    %v186 = vsel %vm95, %v176, 0
    %188 = vmatpush.bf16.msra.mxu0 0
    %189 = vmatpush.bf16.msra.mxu0 0
    %190 = vmatpush.bf16.msra.mxu0 0
    %191 = vmatpush.bf16.msra.mxu0 0
    %192 = vmatpush.bf16.msra.mxu0 0
    %193 = vmatpush.bf16.msra.mxu0 0
    %194 = vmatpush.bf16.msra.mxu0 0
    %195 = vmatpush.bf16.msra.mxu0 %v180
    %196 = vmatmul.bf16.gmra.mxu0 %v178
    %v197 = vpop.f32.mrf.mxu0
    %v198 = vadd.f32 %v77, %v197
    %v199 = vpop.f32.mrf.mxu0
    %200 = vdwg.mxu0
    %201 = vmatpush.bf16.msra.mxu0 0
    %202 = vmatpush.bf16.msra.mxu0 0
    %203 = vmatpush.bf16.msra.mxu0 0
    %204 = vmatpush.bf16.msra.mxu0 0
    %205 = vmatpush.bf16.msra.mxu0 0
    %206 = vmatpush.bf16.msra.mxu0 0
    %207 = vmatpush.bf16.msra.mxu0 0
    %208 = vmatpush.bf16.msra.mxu0 %v182
    %209 = vmatmul.bf16.gmra.mxu0 %v178
    %v210 = vpop.f32.mrf.mxu0
    %v211 = vadd.f32 %v78, %v210
    %v212 = vpop.f32.mrf.mxu0
    %213 = vdwg.mxu0
    %214 = vmatpush.bf16.msra.mxu0 0
    %215 = vmatpush.bf16.msra.mxu0 0
    %216 = vmatpush.bf16.msra.mxu0 0
    %217 = vmatpush.bf16.msra.mxu0 0
    %218 = vmatpush.bf16.msra.mxu0 0
    %219 = vmatpush.bf16.msra.mxu0 0
    %220 = vmatpush.bf16.msra.mxu0 0
    %221 = vmatpush.bf16.msra.mxu0 %v184
    %222 = vmatmul.bf16.gmra.mxu0 %v178
    %v223 = vpop.f32.mrf.mxu0
    %v224 = vadd.f32 %v79, %v223
    %v225 = vpop.f32.mrf.mxu0
    %226 = vdwg.mxu0
    %227 = vmatpush.bf16.msra.mxu0 0
    %228 = vmatpush.bf16.msra.mxu0 0
    %229 = vmatpush.bf16.msra.mxu0 0
    %230 = vmatpush.bf16.msra.mxu0 0
    %231 = vmatpush.bf16.msra.mxu0 0
    %232 = vmatpush.bf16.msra.mxu0 0
    %233 = vmatpush.bf16.msra.mxu0 0
    %234 = vmatpush.bf16.msra.mxu0 %v186
    %235 = vmatmul.bf16.gmra.mxu0 %v178
    %v236 = vpop.f32.mrf.mxu0
    %v237 = vadd.f32 %v80, %v236
    %v238 = vpop.f32.mrf.mxu0
    %239 = vdwg.mxu0
    %v244 = vrot.slane %v211, 6
    %v245 = vrot.slane %v224, 4
    %v246 = vrot.slane %v237, 2
    %v247 = vsel %vm95, %v198, %v244
    %v248 = vsel %vm164, %v245, %v246
    %v249 = vsel %vm166, %v247, %v248
    %s251 = scalar_lea.vmem [#allocation2], 8
    %252 = vst [vmem:[%s251] sm:$0xff] %v249
    %s253 = scalar_lea.vmem %s0, 2
    %v254 = vld [vmem:[%s253] sm:$0x1]
    %255 = vst [vmem:[#allocation1] ss:$4 sm:$0xff] %v41
    %v256 = vld.sshfl [vmem:[#allocation1] sm:$0xff pattern:$0x73625140]
    %v257 = vld.sshfl [vmem:[#allocation1 + $0x8] sm:$0xff pattern:$0x73625140]
    %v258 = vld.sshfl [vmem:[#allocation1 + $0x10] sm:$0xff pattern:$0x73625140]
    %v259 = vld.sshfl [vmem:[#allocation1 + $0x18] sm:$0xff pattern:$0x73625140]
    %v261 = vsel %vm91, %v254, 0
    %v263 = vsel %vm95, %v256, 0
    %v265 = vsel %vm95, %v257, 0
    %v267 = vsel %vm95, %v258, 0
    %v269 = vsel %vm95, %v259, 0
    %271 = vmatpush.bf16.msra.mxu0 0
    %272 = vmatpush.bf16.msra.mxu0 0
    %273 = vmatpush.bf16.msra.mxu0 0
    %274 = vmatpush.bf16.msra.mxu0 0
    %275 = vmatpush.bf16.msra.mxu0 0
    %276 = vmatpush.bf16.msra.mxu0 0
    %277 = vmatpush.bf16.msra.mxu0 0
    %278 = vmatpush.bf16.msra.mxu0 %v263
    %279 = vmatmul.bf16.gmra.mxu0 %v261
    %v280 = vpop.f32.mrf.mxu0
    %v281 = vadd.f32 %v77, %v280
    %v282 = vpop.f32.mrf.mxu0
    %283 = vdwg.mxu0
    %284 = vmatpush.bf16.msra.mxu0 0
    %285 = vmatpush.bf16.msra.mxu0 0
    %286 = vmatpush.bf16.msra.mxu0 0
    %287 = vmatpush.bf16.msra.mxu0 0
    %288 = vmatpush.bf16.msra.mxu0 0
    %289 = vmatpush.bf16.msra.mxu0 0
    %290 = vmatpush.bf16.msra.mxu0 0
    %291 = vmatpush.bf16.msra.mxu0 %v265
    %292 = vmatmul.bf16.gmra.mxu0 %v261
    %v293 = vpop.f32.mrf.mxu0
    %v294 = vadd.f32 %v78, %v293
    %v295 = vpop.f32.mrf.mxu0
    %296 = vdwg.mxu0
    %297 = vmatpush.bf16.msra.mxu0 0
    %298 = vmatpush.bf16.msra.mxu0 0
    %299 = vmatpush.bf16.msra.mxu0 0
    %300 = vmatpush.bf16.msra.mxu0 0
    %301 = vmatpush.bf16.msra.mxu0 0
    %302 = vmatpush.bf16.msra.mxu0 0
    %303 = vmatpush.bf16.msra.mxu0 0
    %304 = vmatpush.bf16.msra.mxu0 %v267
    %305 = vmatmul.bf16.gmra.mxu0 %v261
    %v306 = vpop.f32.mrf.mxu0
    %v307 = vadd.f32 %v79, %v306
    %v308 = vpop.f32.mrf.mxu0
    %309 = vdwg.mxu0
    %310 = vmatpush.bf16.msra.mxu0 0
    %311 = vmatpush.bf16.msra.mxu0 0
    %312 = vmatpush.bf16.msra.mxu0 0
    %313 = vmatpush.bf16.msra.mxu0 0
    %314 = vmatpush.bf16.msra.mxu0 0
    %315 = vmatpush.bf16.msra.mxu0 0
    %316 = vmatpush.bf16.msra.mxu0 0
    %317 = vmatpush.bf16.msra.mxu0 %v269
    %318 = vmatmul.bf16.gmra.mxu0 %v261
    %v319 = vpop.f32.mrf.mxu0
    %v320 = vadd.f32 %v80, %v319
    %v321 = vpop.f32.mrf.mxu0
    %322 = vdwg.mxu0
    %v327 = vrot.slane %v294, 6
    %v328 = vrot.slane %v307, 4
    %v329 = vrot.slane %v320, 2
    %v330 = vsel %vm95, %v281, %v327
    %v331 = vsel %vm164, %v328, %v329
    %v332 = vsel %vm166, %v330, %v331
    %s334 = scalar_lea.vmem [#allocation2], 16
    %335 = vst [vmem:[%s334] sm:$0xff] %v332
    %s336 = scalar_lea.vmem %s0, 3
    %v337 = vld [vmem:[%s336] sm:$0x1]
    %338 = vst [vmem:[#allocation1] ss:$4 sm:$0xff] %v41
    %v339 = vld.sshfl [vmem:[#allocation1] sm:$0xff pattern:$0x73625140]
    %v340 = vld.sshfl [vmem:[#allocation1 + $0x8] sm:$0xff pattern:$0x73625140]
    %v341 = vld.sshfl [vmem:[#allocation1 + $0x10] sm:$0xff pattern:$0x73625140]
    %v342 = vld.sshfl [vmem:[#allocation1 + $0x18] sm:$0xff pattern:$0x73625140]
    %v344 = vsel %vm91, %v337, 0
    %v346 = vsel %vm95, %v339, 0
    %v348 = vsel %vm95, %v340, 0
    %v350 = vsel %vm95, %v341, 0
    %v352 = vsel %vm95, %v342, 0
    %354 = vmatpush.bf16.msra.mxu0 0
    %355 = vmatpush.bf16.msra.mxu0 0
    %356 = vmatpush.bf16.msra.mxu0 0
    %357 = vmatpush.bf16.msra.mxu0 0
    %358 = vmatpush.bf16.msra.mxu0 0
    %359 = vmatpush.bf16.msra.mxu0 0
    %360 = vmatpush.bf16.msra.mxu0 0
    %361 = vmatpush.bf16.msra.mxu0 %v346
    %362 = vmatmul.bf16.gmra.mxu0 %v344
    %v363 = vpop.f32.mrf.mxu0
    %v364 = vadd.f32 %v77, %v363
    %v365 = vpop.f32.mrf.mxu0
    %366 = vdwg.mxu0
    %367 = vmatpush.bf16.msra.mxu0 0
    %368 = vmatpush.bf16.msra.mxu0 0
    %369 = vmatpush.bf16.msra.mxu0 0
    %370 = vmatpush.bf16.msra.mxu0 0
    %371 = vmatpush.bf16.msra.mxu0 0
    %372 = vmatpush.bf16.msra.mxu0 0
    %373 = vmatpush.bf16.msra.mxu0 0
    %374 = vmatpush.bf16.msra.mxu0 %v348
    %375 = vmatmul.bf16.gmra.mxu0 %v344
    %v376 = vpop.f32.mrf.mxu0
    %v377 = vadd.f32 %v78, %v376
    %v378 = vpop.f32.mrf.mxu0
    %379 = vdwg.mxu0
    %380 = vmatpush.bf16.msra.mxu0 0
    %381 = vmatpush.bf16.msra.mxu0 0
    %382 = vmatpush.bf16.msra.mxu0 0
    %383 = vmatpush.bf16.msra.mxu0 0
    %384 = vmatpush.bf16.msra.mxu0 0
    %385 = vmatpush.bf16.msra.mxu0 0
    %386 = vmatpush.bf16.msra.mxu0 0
    %387 = vmatpush.bf16.msra.mxu0 %v350
    %388 = vmatmul.bf16.gmra.mxu0 %v344
    %v389 = vpop.f32.mrf.mxu0
    %v390 = vadd.f32 %v79, %v389
    %v391 = vpop.f32.mrf.mxu0
    %392 = vdwg.mxu0
    %393 = vmatpush.bf16.msra.mxu0 0
    %394 = vmatpush.bf16.msra.mxu0 0
    %395 = vmatpush.bf16.msra.mxu0 0
    %396 = vmatpush.bf16.msra.mxu0 0
    %397 = vmatpush.bf16.msra.mxu0 0
    %398 = vmatpush.bf16.msra.mxu0 0
    %399 = vmatpush.bf16.msra.mxu0 0
    %400 = vmatpush.bf16.msra.mxu0 %v352
    %401 = vmatmul.bf16.gmra.mxu0 %v344
    %v402 = vpop.f32.mrf.mxu0
    %v403 = vadd.f32 %v80, %v402
    %v404 = vpop.f32.mrf.mxu0
    %405 = vdwg.mxu0
    %v410 = vrot.slane %v377, 6
    %v411 = vrot.slane %v390, 4
    %v412 = vrot.slane %v403, 2
    %v413 = vsel %vm95, %v364, %v410
    %v414 = vsel %vm164, %v411, %v412
    %v415 = vsel %vm166, %v413, %v414
    %s417 = scalar_lea.vmem [#allocation2], 24
    %418 = vst [vmem:[%s417] sm:$0xff] %v415
    %s419 = scalar_lea.vmem %s0, 4
    %v420 = vld [vmem:[%s419] sm:$0x1]
    %421 = vst [vmem:[#allocation1] ss:$4 sm:$0xff] %v41
    %v422 = vld.sshfl [vmem:[#allocation1] sm:$0xff pattern:$0x73625140]
    %v423 = vld.sshfl [vmem:[#allocation1 + $0x8] sm:$0xff pattern:$0x73625140]
    %v424 = vld.sshfl [vmem:[#allocation1 + $0x10] sm:$0xff pattern:$0x73625140]
    %v425 = vld.sshfl [vmem:[#allocation1 + $0x18] sm:$0xff pattern:$0x73625140]
    %v427 = vsel %vm91, %v420, 0
    %v429 = vsel %vm95, %v422, 0
    %v431 = vsel %vm95, %v423, 0
    %v433 = vsel %vm95, %v424, 0
    %v435 = vsel %vm95, %v425, 0
    %437 = vmatpush.bf16.msra.mxu0 0
    %438 = vmatpush.bf16.msra.mxu0 0
    %439 = vmatpush.bf16.msra.mxu0 0
    %440 = vmatpush.bf16.msra.mxu0 0
    %441 = vmatpush.bf16.msra.mxu0 0
    %442 = vmatpush.bf16.msra.mxu0 0
    %443 = vmatpush.bf16.msra.mxu0 0
    %444 = vmatpush.bf16.msra.mxu0 %v429
    %445 = vmatmul.bf16.gmra.mxu0 %v427
    %v446 = vpop.f32.mrf.mxu0
    %v447 = vadd.f32 %v77, %v446
    %v448 = vpop.f32.mrf.mxu0
    %449 = vdwg.mxu0
    %450 = vmatpush.bf16.msra.mxu0 0
    %451 = vmatpush.bf16.msra.mxu0 0
    %452 = vmatpush.bf16.msra.mxu0 0
    %453 = vmatpush.bf16.msra.mxu0 0
    %454 = vmatpush.bf16.msra.mxu0 0
    %455 = vmatpush.bf16.msra.mxu0 0
    %456 = vmatpush.bf16.msra.mxu0 0
    %457 = vmatpush.bf16.msra.mxu0 %v431
    %458 = vmatmul.bf16.gmra.mxu0 %v427
    %v459 = vpop.f32.mrf.mxu0
    %v460 = vadd.f32 %v78, %v459
    %v461 = vpop.f32.mrf.mxu0
    %462 = vdwg.mxu0
    %463 = vmatpush.bf16.msra.mxu0 0
    %464 = vmatpush.bf16.msra.mxu0 0
    %465 = vmatpush.bf16.msra.mxu0 0
    %466 = vmatpush.bf16.msra.mxu0 0
    %467 = vmatpush.bf16.msra.mxu0 0
    %468 = vmatpush.bf16.msra.mxu0 0
    %469 = vmatpush.bf16.msra.mxu0 0
    %470 = vmatpush.bf16.msra.mxu0 %v433
    %471 = vmatmul.bf16.gmra.mxu0 %v427
    %v472 = vpop.f32.mrf.mxu0
    %v473 = vadd.f32 %v79, %v472
    %v474 = vpop.f32.mrf.mxu0
    %475 = vdwg.mxu0
    %476 = vmatpush.bf16.msra.mxu0 0
    %477 = vmatpush.bf16.msra.mxu0 0
    %478 = vmatpush.bf16.msra.mxu0 0
    %479 = vmatpush.bf16.msra.mxu0 0
    %480 = vmatpush.bf16.msra.mxu0 0
    %481 = vmatpush.bf16.msra.mxu0 0
    %482 = vmatpush.bf16.msra.mxu0 0
    %483 = vmatpush.bf16.msra.mxu0 %v435
    %484 = vmatmul.bf16.gmra.mxu0 %v427
    %v485 = vpop.f32.mrf.mxu0
    %v486 = vadd.f32 %v80, %v485
    %v487 = vpop.f32.mrf.mxu0
    %488 = vdwg.mxu0
    %v493 = vrot.slane %v460, 6
    %v494 = vrot.slane %v473, 4
    %v495 = vrot.slane %v486, 2
    %v496 = vsel %vm95, %v447, %v493
    %v497 = vsel %vm164, %v494, %v495
    %v498 = vsel %vm166, %v496, %v497
    %s500 = scalar_lea.vmem [#allocation2], 32
    %501 = vst [vmem:[%s500] sm:$0xff] %v498
    %s502 = scalar_lea.vmem %s0, 5
    %v503 = vld [vmem:[%s502] sm:$0x1]
    %504 = vst [vmem:[#allocation1] ss:$4 sm:$0xff] %v41
    %v505 = vld.sshfl [vmem:[#allocation1] sm:$0xff pattern:$0x73625140]
    %v506 = vld.sshfl [vmem:[#allocation1 + $0x8] sm:$0xff pattern:$0x73625140]
    %v507 = vld.sshfl [vmem:[#allocation1 + $0x10] sm:$0xff pattern:$0x73625140]
    %v508 = vld.sshfl [vmem:[#allocation1 + $0x18] sm:$0xff pattern:$0x73625140]
    %v510 = vsel %vm91, %v503, 0
    %v512 = vsel %vm95, %v505, 0
    %v514 = vsel %vm95, %v506, 0
    %v516 = vsel %vm95, %v507, 0
    %v518 = vsel %vm95, %v508, 0
    %520 = vmatpush.bf16.msra.mxu0 0
    %521 = vmatpush.bf16.msra.mxu0 0
    %522 = vmatpush.bf16.msra.mxu0 0
    %523 = vmatpush.bf16.msra.mxu0 0
    %524 = vmatpush.bf16.msra.mxu0 0
    %525 = vmatpush.bf16.msra.mxu0 0
    %526 = vmatpush.bf16.msra.mxu0 0
    %527 = vmatpush.bf16.msra.mxu0 %v512
    %528 = vmatmul.bf16.gmra.mxu0 %v510
    %v529 = vpop.f32.mrf.mxu0
    %v530 = vadd.f32 %v77, %v529
    %v531 = vpop.f32.mrf.mxu0
    %532 = vdwg.mxu0
    %533 = vmatpush.bf16.msra.mxu0 0
    %534 = vmatpush.bf16.msra.mxu0 0
    %535 = vmatpush.bf16.msra.mxu0 0
    %536 = vmatpush.bf16.msra.mxu0 0
    %537 = vmatpush.bf16.msra.mxu0 0
    %538 = vmatpush.bf16.msra.mxu0 0
    %539 = vmatpush.bf16.msra.mxu0 0
    %540 = vmatpush.bf16.msra.mxu0 %v514
    %541 = vmatmul.bf16.gmra.mxu0 %v510
    %v542 = vpop.f32.mrf.mxu0
    %v543 = vadd.f32 %v78, %v542
    %v544 = vpop.f32.mrf.mxu0
    %545 = vdwg.mxu0
    %546 = vmatpush.bf16.msra.mxu0 0
    %547 = vmatpush.bf16.msra.mxu0 0
    %548 = vmatpush.bf16.msra.mxu0 0
    %549 = vmatpush.bf16.msra.mxu0 0
    %550 = vmatpush.bf16.msra.mxu0 0
    %551 = vmatpush.bf16.msra.mxu0 0
    %552 = vmatpush.bf16.msra.mxu0 0
    %553 = vmatpush.bf16.msra.mxu0 %v516
    %554 = vmatmul.bf16.gmra.mxu0 %v510
    %v555 = vpop.f32.mrf.mxu0
    %v556 = vadd.f32 %v79, %v555
    %v557 = vpop.f32.mrf.mxu0
    %558 = vdwg.mxu0
    %559 = vmatpush.bf16.msra.mxu0 0
    %560 = vmatpush.bf16.msra.mxu0 0
    %561 = vmatpush.bf16.msra.mxu0 0
    %562 = vmatpush.bf16.msra.mxu0 0
    %563 = vmatpush.bf16.msra.mxu0 0
    %564 = vmatpush.bf16.msra.mxu0 0
    %565 = vmatpush.bf16.msra.mxu0 0
    %566 = vmatpush.bf16.msra.mxu0 %v518
    %567 = vmatmul.bf16.gmra.mxu0 %v510
    %v568 = vpop.f32.mrf.mxu0
    %v569 = vadd.f32 %v80, %v568
    %v570 = vpop.f32.mrf.mxu0
    %571 = vdwg.mxu0
    %v576 = vrot.slane %v543, 6
    %v577 = vrot.slane %v556, 4
    %v578 = vrot.slane %v569, 2
    %v579 = vsel %vm95, %v530, %v576
    %v580 = vsel %vm164, %v577, %v578
    %v581 = vsel %vm166, %v579, %v580
    %s583 = scalar_lea.vmem [#allocation2], 40
    %584 = vst [vmem:[%s583] sm:$0xff] %v581
    %s585 = scalar_lea.vmem %s0, 6
    %v586 = vld [vmem:[%s585] sm:$0x1]
    %587 = vst [vmem:[#allocation1] ss:$4 sm:$0xff] %v41
    %v588 = vld.sshfl [vmem:[#allocation1] sm:$0xff pattern:$0x73625140]
    %v589 = vld.sshfl [vmem:[#allocation1 + $0x8] sm:$0xff pattern:$0x73625140]
    %v590 = vld.sshfl [vmem:[#allocation1 + $0x10] sm:$0xff pattern:$0x73625140]
    %v591 = vld.sshfl [vmem:[#allocation1 + $0x18] sm:$0xff pattern:$0x73625140]
    %v593 = vsel %vm91, %v586, 0
    %v595 = vsel %vm95, %v588, 0
    %v597 = vsel %vm95, %v589, 0
    %v599 = vsel %vm95, %v590, 0
    %v601 = vsel %vm95, %v591, 0
    %603 = vmatpush.bf16.msra.mxu0 0
    %604 = vmatpush.bf16.msra.mxu0 0
    %605 = vmatpush.bf16.msra.mxu0 0
    %606 = vmatpush.bf16.msra.mxu0 0
    %607 = vmatpush.bf16.msra.mxu0 0
    %608 = vmatpush.bf16.msra.mxu0 0
    %609 = vmatpush.bf16.msra.mxu0 0
    %610 = vmatpush.bf16.msra.mxu0 %v595
    %611 = vmatmul.bf16.gmra.mxu0 %v593
    %v612 = vpop.f32.mrf.mxu0
    %v613 = vadd.f32 %v77, %v612
    %v614 = vpop.f32.mrf.mxu0
    %615 = vdwg.mxu0
    %616 = vmatpush.bf16.msra.mxu0 0
    %617 = vmatpush.bf16.msra.mxu0 0
    %618 = vmatpush.bf16.msra.mxu0 0
    %619 = vmatpush.bf16.msra.mxu0 0
    %620 = vmatpush.bf16.msra.mxu0 0
    %621 = vmatpush.bf16.msra.mxu0 0
    %622 = vmatpush.bf16.msra.mxu0 0
    %623 = vmatpush.bf16.msra.mxu0 %v597
    %624 = vmatmul.bf16.gmra.mxu0 %v593
    %v625 = vpop.f32.mrf.mxu0
    %v626 = vadd.f32 %v78, %v625
    %v627 = vpop.f32.mrf.mxu0
    %628 = vdwg.mxu0
    %629 = vmatpush.bf16.msra.mxu0 0
    %630 = vmatpush.bf16.msra.mxu0 0
    %631 = vmatpush.bf16.msra.mxu0 0
    %632 = vmatpush.bf16.msra.mxu0 0
    %633 = vmatpush.bf16.msra.mxu0 0
    %634 = vmatpush.bf16.msra.mxu0 0
    %635 = vmatpush.bf16.msra.mxu0 0
    %636 = vmatpush.bf16.msra.mxu0 %v599
    %637 = vmatmul.bf16.gmra.mxu0 %v593
    %v638 = vpop.f32.mrf.mxu0
    %v639 = vadd.f32 %v79, %v638
    %v640 = vpop.f32.mrf.mxu0
    %641 = vdwg.mxu0
    %642 = vmatpush.bf16.msra.mxu0 0
    %643 = vmatpush.bf16.msra.mxu0 0
    %644 = vmatpush.bf16.msra.mxu0 0
    %645 = vmatpush.bf16.msra.mxu0 0
    %646 = vmatpush.bf16.msra.mxu0 0
    %647 = vmatpush.bf16.msra.mxu0 0
    %648 = vmatpush.bf16.msra.mxu0 0
    %649 = vmatpush.bf16.msra.mxu0 %v601
    %650 = vmatmul.bf16.gmra.mxu0 %v593
    %v651 = vpop.f32.mrf.mxu0
    %v652 = vadd.f32 %v80, %v651
    %v653 = vpop.f32.mrf.mxu0
    %654 = vdwg.mxu0
    %v659 = vrot.slane %v626, 6
    %v660 = vrot.slane %v639, 4
    %v661 = vrot.slane %v652, 2
    %v662 = vsel %vm95, %v613, %v659
    %v663 = vsel %vm164, %v660, %v661
    %v664 = vsel %vm166, %v662, %v663
    %s666 = scalar_lea.vmem [#allocation2], 48
    %667 = vst [vmem:[%s666] sm:$0xff] %v664
    %s668 = scalar_lea.vmem %s0, 7
    %v669 = vld [vmem:[%s668] sm:$0x1]
    %670 = vst [vmem:[#allocation1] ss:$4 sm:$0xff] %v41
    %v671 = vld.sshfl [vmem:[#allocation1] sm:$0xff pattern:$0x73625140]
    %v672 = vld.sshfl [vmem:[#allocation1 + $0x8] sm:$0xff pattern:$0x73625140]
    %v673 = vld.sshfl [vmem:[#allocation1 + $0x10] sm:$0xff pattern:$0x73625140]
    %v674 = vld.sshfl [vmem:[#allocation1 + $0x18] sm:$0xff pattern:$0x73625140]
    %v676 = vsel %vm91, %v669, 0
    %v678 = vsel %vm95, %v671, 0
    %v680 = vsel %vm95, %v672, 0
    %v682 = vsel %vm95, %v673, 0
    %v684 = vsel %vm95, %v674, 0
    %686 = vmatpush.bf16.msra.mxu0 0
    %687 = vmatpush.bf16.msra.mxu0 0
    %688 = vmatpush.bf16.msra.mxu0 0
    %689 = vmatpush.bf16.msra.mxu0 0
    %690 = vmatpush.bf16.msra.mxu0 0
    %691 = vmatpush.bf16.msra.mxu0 0
    %692 = vmatpush.bf16.msra.mxu0 0
    %693 = vmatpush.bf16.msra.mxu0 %v678
    %694 = vmatmul.bf16.gmra.mxu0 %v676
    %v695 = vpop.f32.mrf.mxu0
    %v696 = vadd.f32 %v77, %v695
    %v697 = vpop.f32.mrf.mxu0
    %698 = vdwg.mxu0
    %699 = vmatpush.bf16.msra.mxu0 0
    %700 = vmatpush.bf16.msra.mxu0 0
    %701 = vmatpush.bf16.msra.mxu0 0
    %702 = vmatpush.bf16.msra.mxu0 0
    %703 = vmatpush.bf16.msra.mxu0 0
    %704 = vmatpush.bf16.msra.mxu0 0
    %705 = vmatpush.bf16.msra.mxu0 0
    %706 = vmatpush.bf16.msra.mxu0 %v680
    %707 = vmatmul.bf16.gmra.mxu0 %v676
    %v708 = vpop.f32.mrf.mxu0
    %v709 = vadd.f32 %v78, %v708
    %v710 = vpop.f32.mrf.mxu0
    %711 = vdwg.mxu0
    %712 = vmatpush.bf16.msra.mxu0 0
    %713 = vmatpush.bf16.msra.mxu0 0
    %714 = vmatpush.bf16.msra.mxu0 0
    %715 = vmatpush.bf16.msra.mxu0 0
    %716 = vmatpush.bf16.msra.mxu0 0
    %717 = vmatpush.bf16.msra.mxu0 0
    %718 = vmatpush.bf16.msra.mxu0 0
    %719 = vmatpush.bf16.msra.mxu0 %v682
    %720 = vmatmul.bf16.gmra.mxu0 %v676
    %v721 = vpop.f32.mrf.mxu0
    %v722 = vadd.f32 %v79, %v721
    %v723 = vpop.f32.mrf.mxu0
    %724 = vdwg.mxu0
    %725 = vmatpush.bf16.msra.mxu0 0
    %726 = vmatpush.bf16.msra.mxu0 0
    %727 = vmatpush.bf16.msra.mxu0 0
    %728 = vmatpush.bf16.msra.mxu0 0
    %729 = vmatpush.bf16.msra.mxu0 0
    %730 = vmatpush.bf16.msra.mxu0 0
    %731 = vmatpush.bf16.msra.mxu0 0
    %732 = vmatpush.bf16.msra.mxu0 %v684
    %733 = vmatmul.bf16.gmra.mxu0 %v676
    %v734 = vpop.f32.mrf.mxu0
    %v735 = vadd.f32 %v80, %v734
    %v736 = vpop.f32.mrf.mxu0
    %737 = vdwg.mxu0
    %v742 = vrot.slane %v709, 6
    %v743 = vrot.slane %v722, 4
    %v744 = vrot.slane %v735, 2
    %v745 = vsel %vm95, %v696, %v742
    %v746 = vsel %vm164, %v743, %v744
    %v747 = vsel %vm166, %v745, %v746
    %s749 = scalar_lea.vmem [#allocation2], 56
    %750 = vst [vmem:[%s749] sm:$0xff] %v747
    %v751 = vld [vmem:[#allocation2] sm:$0xff]
    %v784 = vunpack.c.l.b16 %v42
    %v785 = vunpack.c.h.b16 %v42
    %v786 = vunpack.c.l.b16 %v43
    %v787 = vunpack.c.h.b16 %v43
    %v788 = vunpack.c.l.b16 %v44
    %v789 = vunpack.c.h.b16 %v44
    %v790 = vunpack.c.l.b16 %v45
    %v791 = vunpack.c.h.b16 %v45
    %v792 = vunpack.c.l.b16 %v46
    %v793 = vunpack.c.h.b16 %v46
    %v794 = vunpack.c.l.b16 %v47
    %v795 = vunpack.c.h.b16 %v47
    %v796 = vunpack.c.l.b16 %v48
    %v797 = vunpack.c.h.b16 %v48
    %v798 = vunpack.c.l.b16 %v49
    %v799 = vunpack.c.h.b16 %v49
    %v800 = vunpack.c.l.b16 %v50
    %v801 = vunpack.c.h.b16 %v50
    %v802 = vunpack.c.l.b16 %v51
    %v803 = vunpack.c.h.b16 %v51
    %v804 = vunpack.c.l.b16 %v52
    %v805 = vunpack.c.h.b16 %v52
    %v806 = vunpack.c.l.b16 %v53
    %v807 = vunpack.c.h.b16 %v53
    %v808 = vunpack.c.l.b16 %v54
    %v809 = vunpack.c.h.b16 %v54
    %v810 = vunpack.c.l.b16 %v55
    %v811 = vunpack.c.h.b16 %v55
    %v812 = vunpack.c.l.b16 %v56
    %v813 = vunpack.c.h.b16 %v56
    %v814 = vunpack.c.l.b16 %v57
    %v815 = vunpack.c.h.b16 %v57
    %v816 = vunpack.c.l.b16 %v58
    %v817 = vunpack.c.h.b16 %v58
    %v818 = vunpack.c.l.b16 %v59
    %v819 = vunpack.c.h.b16 %v59
    %v820 = vunpack.c.l.b16 %v60
    %v821 = vunpack.c.h.b16 %v60
    %v822 = vunpack.c.l.b16 %v61
    %v823 = vunpack.c.h.b16 %v61
    %v824 = vunpack.c.l.b16 %v62
    %v825 = vunpack.c.h.b16 %v62
    %v826 = vunpack.c.l.b16 %v63
    %v827 = vunpack.c.h.b16 %v63
    %v828 = vunpack.c.l.b16 %v64
    %v829 = vunpack.c.h.b16 %v64
    %v830 = vunpack.c.l.b16 %v65
    %v831 = vunpack.c.h.b16 %v65
    %v832 = vunpack.c.l.b16 %v66
    %v833 = vunpack.c.h.b16 %v66
    %v834 = vunpack.c.l.b16 %v67
    %v835 = vunpack.c.h.b16 %v67
    %v836 = vunpack.c.l.b16 %v68
    %v837 = vunpack.c.h.b16 %v68
    %v838 = vunpack.c.l.b16 %v69
    %v839 = vunpack.c.h.b16 %v69
    %v840 = vunpack.c.l.b16 %v70
    %v841 = vunpack.c.h.b16 %v70
    %v842 = vunpack.c.l.b16 %v71
    %v843 = vunpack.c.h.b16 %v71
    %v844 = vunpack.c.l.b16 %v72
    %v845 = vunpack.c.h.b16 %v72
    %v846 = vunpack.c.l.b16 %v73
    %v847 = vunpack.c.h.b16 %v73
    %v848 = vpack.c.b16 %v788, %v784
    %v849 = vpack.c.b16 %v789, %v785
    %v850 = vpack.c.b16 %v790, %v786
    %v851 = vpack.c.b16 %v791, %v787
    %v852 = vpack.c.b16 %v796, %v792
    %v853 = vpack.c.b16 %v797, %v793
    %v854 = vpack.c.b16 %v798, %v794
    %v855 = vpack.c.b16 %v799, %v795
    %v856 = vpack.c.b16 %v804, %v800
    %v857 = vpack.c.b16 %v805, %v801
    %v858 = vpack.c.b16 %v806, %v802
    %v859 = vpack.c.b16 %v807, %v803
    %v860 = vpack.c.b16 %v812, %v808
    %v861 = vpack.c.b16 %v813, %v809
    %v862 = vpack.c.b16 %v814, %v810
    %v863 = vpack.c.b16 %v815, %v811
    %v864 = vpack.c.b16 %v820, %v816
    %v865 = vpack.c.b16 %v821, %v817
    %v866 = vpack.c.b16 %v822, %v818
    %v867 = vpack.c.b16 %v823, %v819
    %v868 = vpack.c.b16 %v828, %v824
    %v869 = vpack.c.b16 %v829, %v825
    %v870 = vpack.c.b16 %v830, %v826
    %v871 = vpack.c.b16 %v831, %v827
    %v872 = vpack.c.b16 %v836, %v832
    %v873 = vpack.c.b16 %v837, %v833
    %v874 = vpack.c.b16 %v838, %v834
    %v875 = vpack.c.b16 %v839, %v835
    %v876 = vpack.c.b16 %v844, %v840
    %v877 = vpack.c.b16 %v845, %v841
    %v878 = vpack.c.b16 %v846, %v842
    %v879 = vpack.c.b16 %v847, %v843
    %912 = vmatpush.bf16.msra.mxu0 %v876
    %913 = vmatpush.bf16.msra.mxu0 %v872
    %914 = vmatpush.bf16.msra.mxu0 %v868
    %915 = vmatpush.bf16.msra.mxu0 %v864
    %916 = vmatpush.bf16.msra.mxu0 %v860
    %917 = vmatpush.bf16.msra.mxu0 %v856
    %918 = vmatpush.bf16.msra.mxu0 %v852
    %919 = vmatpush.bf16.msra.mxu0 %v848
    %920 = vmatmul.bf16.gmra.mxu0 0
    %v921 = vpop.f32.mrf.mxu0
    %v922 = vadd.f32 0.0, %v921
    %v923 = vpop.f32.mrf.mxu0
    %924 = vdwg.mxu0
    %925 = vmatpush.bf16.msra.mxu0 %v877
    %926 = vmatpush.bf16.msra.mxu0 %v873
    %927 = vmatpush.bf16.msra.mxu0 %v869
    %928 = vmatpush.bf16.msra.mxu0 %v865
    %929 = vmatpush.bf16.msra.mxu0 %v861
    %930 = vmatpush.bf16.msra.mxu0 %v857
    %931 = vmatpush.bf16.msra.mxu0 %v853
    %932 = vmatpush.bf16.msra.mxu0 %v849
    %933 = vmatmul.bf16.gmra.mxu0 0
    %v934 = vpop.f32.mrf.mxu0
    %v935 = vadd.f32 0.0, %v934
    %v936 = vpop.f32.mrf.mxu0
    %937 = vdwg.mxu0
    %938 = vmatpush.bf16.msra.mxu0 %v878
    %939 = vmatpush.bf16.msra.mxu0 %v874
    %940 = vmatpush.bf16.msra.mxu0 %v870
    %941 = vmatpush.bf16.msra.mxu0 %v866
    %942 = vmatpush.bf16.msra.mxu0 %v862
    %943 = vmatpush.bf16.msra.mxu0 %v858
    %944 = vmatpush.bf16.msra.mxu0 %v854
    %945 = vmatpush.bf16.msra.mxu0 %v850
    %946 = vmatmul.bf16.gmra.mxu0 0
    %v947 = vpop.f32.mrf.mxu0
    %v948 = vadd.f32 0.0, %v947
    %v949 = vpop.f32.mrf.mxu0
    %950 = vdwg.mxu0
    %951 = vmatpush.bf16.msra.mxu0 %v879
    %952 = vmatpush.bf16.msra.mxu0 %v875
    %953 = vmatpush.bf16.msra.mxu0 %v871
    %954 = vmatpush.bf16.msra.mxu0 %v867
    %955 = vmatpush.bf16.msra.mxu0 %v863
    %956 = vmatpush.bf16.msra.mxu0 %v859
    %957 = vmatpush.bf16.msra.mxu0 %v855
    %958 = vmatpush.bf16.msra.mxu0 %v851
    %959 = vmatmul.bf16.gmra.mxu0 0
    %v960 = vpop.f32.mrf.mxu0
    %v961 = vadd.f32 0.0, %v960
    %v962 = vpop.f32.mrf.mxu0
    %963 = vdwg.mxu0
    %v968 = vrot.slane %v935, 6
    %v969 = vrot.slane %v948, 4
    %v970 = vrot.slane %v961, 2
    %v971 = vsel %vm95, %v922, %v968
    %v972 = vsel %vm164, %v969, %v970
    %v973 = vsel %vm166, %v971, %v972
    %v975 = vadd.f32 %v751, %v973
    %v976 = vxor.u32 %v975, 2147483648
    %v977 = vmul.f32 %v976, 1.442695
    %v978 = vpow.pop %v977
    %v979 = vadd.f32 %v978, 1.0
    %v980 = vrcp.pop %v979
    %v981 = vmul.f32 %v979, %v980
    %v982 = vsub.f32 1.0, %v981
    %v983 = vmul.f32 %v980, %v982
    %v984 = vadd.f32 %v980, %v983
    %vm985 = vweird.f32 %v979
    %vm986 = vweird.f32 %v980
    %vm987 = vmor %vm985, %vm986
    %v988 = vsel %vm987, %v980, %v984
    %v989 = vand.u32 2147483647, %v979
    %vm990 = vcmp.eq.f32.partialorder %v989, 8.507059e+37
    %v991 = vand.u32 %v979, 2147483648
    %v992 = vor.u32 1.1754944e-38, %v991
    %v993 = vsel %vm990, %v992, %v988
    %v994 = vmul.f32 1.0, %v993
    %v996 = vrot.slane %v975, 2
    %v998 = vxor.u32 %v996, 2147483648
    %v999 = vmul.f32 %v998, 1.442695
    %v1000 = vpow.pop %v999
    %v1001 = vadd.f32 %v1000, 1.0
    %v1002 = vrcp.pop %v1001
    %v1003 = vmul.f32 %v1001, %v1002
    %v1004 = vsub.f32 1.0, %v1003
    %v1005 = vmul.f32 %v1002, %v1004
    %v1006 = vadd.f32 %v1002, %v1005
    %vm1007 = vweird.f32 %v1001
    %vm1008 = vweird.f32 %v1002
    %vm1009 = vmor %vm1007, %vm1008
    %v1010 = vsel %vm1009, %v1002, %v1006
    %v1011 = vand.u32 2147483647, %v1001
    %vm1012 = vcmp.eq.f32.partialorder %v1011, 8.507059e+37
    %v1013 = vand.u32 %v1001, 2147483648
    %v1014 = vor.u32 1.1754944e-38, %v1013
    %v1015 = vsel %vm1012, %v1014, %v1010
    %v1016 = vmul.f32 1.0, %v1015
    %v1017 = vrot.slane %v975, 4
    %v1019 = vtanh.pop %v1017
    %v1020 = vrot.slane %v975, 6
    %v1022 = vxor.u32 %v1020, 2147483648
    %v1023 = vmul.f32 %v1022, 1.442695
    %v1024 = vpow.pop %v1023
    %v1025 = vadd.f32 %v1024, 1.0
    %v1026 = vrcp.pop %v1025
    %v1027 = vmul.f32 %v1025, %v1026
    %v1028 = vsub.f32 1.0, %v1027
    %v1029 = vmul.f32 %v1026, %v1028
    %v1030 = vadd.f32 %v1026, %v1029
    %vm1031 = vweird.f32 %v1025
    %vm1032 = vweird.f32 %v1026
    %vm1033 = vmor %vm1031, %vm1032
    %v1034 = vsel %vm1033, %v1026, %v1030
    %v1035 = vand.u32 2147483647, %v1025
    %vm1036 = vcmp.eq.f32.partialorder %v1035, 8.507059e+37
    %v1037 = vand.u32 %v1025, 2147483648
    %v1038 = vor.u32 1.1754944e-38, %v1037
    %v1039 = vsel %vm1036, %v1038, %v1034
    %v1040 = vmul.f32 1.0, %v1039
    %v1041 = vmul.f32 %v1016, 0.0
    %v1042 = vmul.f32 %v994, %v1019
    %v1043 = vadd.f32 %v1041, %v1042
    %v1044 = vtanh.pop %v1043
    %v1045 = vmul.f32 %v1040, %v1044
    %v1046 = vld [vmem:[%s251] sm:$0xff]
    %v1047 = vpack.c.bf16 %v1045, %v1045
    %1048 = vmatpush.bf16.msra.mxu0 %v876
    %1049 = vmatpush.bf16.msra.mxu0 %v872
    %1050 = vmatpush.bf16.msra.mxu0 %v868
    %1051 = vmatpush.bf16.msra.mxu0 %v864
    %1052 = vmatpush.bf16.msra.mxu0 %v860
    %1053 = vmatpush.bf16.msra.mxu0 %v856
    %1054 = vmatpush.bf16.msra.mxu0 %v852
    %1055 = vmatpush.bf16.msra.mxu0 %v848
    %1056 = vmatmul.bf16.gmra.mxu0 %v1047
    %v1057 = vpop.f32.mrf.mxu0
    %v1058 = vadd.f32 0.0, %v1057
    %v1059 = vpop.f32.mrf.mxu0
    %1060 = vdwg.mxu0
    %1061 = vmatpush.bf16.msra.mxu0 %v877
    %1062 = vmatpush.bf16.msra.mxu0 %v873
    %1063 = vmatpush.bf16.msra.mxu0 %v869
    %1064 = vmatpush.bf16.msra.mxu0 %v865
    %1065 = vmatpush.bf16.msra.mxu0 %v861
    %1066 = vmatpush.bf16.msra.mxu0 %v857
    %1067 = vmatpush.bf16.msra.mxu0 %v853
    %1068 = vmatpush.bf16.msra.mxu0 %v849
    %1069 = vmatmul.bf16.gmra.mxu0 %v1047
    %v1070 = vpop.f32.mrf.mxu0
    %v1071 = vadd.f32 0.0, %v1070
    %v1072 = vpop.f32.mrf.mxu0
    %1073 = vdwg.mxu0
    %1074 = vmatpush.bf16.msra.mxu0 %v878
    %1075 = vmatpush.bf16.msra.mxu0 %v874
    %1076 = vmatpush.bf16.msra.mxu0 %v870
    %1077 = vmatpush.bf16.msra.mxu0 %v866
    %1078 = vmatpush.bf16.msra.mxu0 %v862
    %1079 = vmatpush.bf16.msra.mxu0 %v858
    %1080 = vmatpush.bf16.msra.mxu0 %v854
    %1081 = vmatpush.bf16.msra.mxu0 %v850
    %1082 = vmatmul.bf16.gmra.mxu0 %v1047
    %v1083 = vpop.f32.mrf.mxu0
    %v1084 = vadd.f32 0.0, %v1083
    %v1085 = vpop.f32.mrf.mxu0
    %1086 = vdwg.mxu0
    %1087 = vmatpush.bf16.msra.mxu0 %v879
    %1088 = vmatpush.bf16.msra.mxu0 %v875
    %1089 = vmatpush.bf16.msra.mxu0 %v871
    %1090 = vmatpush.bf16.msra.mxu0 %v867
    %1091 = vmatpush.bf16.msra.mxu0 %v863
    %1092 = vmatpush.bf16.msra.mxu0 %v859
    %1093 = vmatpush.bf16.msra.mxu0 %v855
    %1094 = vmatpush.bf16.msra.mxu0 %v851
    %1095 = vmatmul.bf16.gmra.mxu0 %v1047
    %v1096 = vpop.f32.mrf.mxu0
    %v1097 = vadd.f32 0.0, %v1096
    %v1098 = vpop.f32.mrf.mxu0
    %1099 = vdwg.mxu0
    %v1104 = vrot.slane %v1071, 6
    %v1105 = vrot.slane %v1084, 4
    %v1106 = vrot.slane %v1097, 2
    %v1107 = vsel %vm95, %v1058, %v1104
    %v1108 = vsel %vm164, %v1105, %v1106
    %v1109 = vsel %vm166, %v1107, %v1108
    %v1111 = vadd.f32 %v1046, %v1109
    %v1112 = vxor.u32 %v1111, 2147483648
    %v1113 = vmul.f32 %v1112, 1.442695
    %v1114 = vpow.pop %v1113
    %v1115 = vadd.f32 %v1114, 1.0
    %v1116 = vrcp.pop %v1115
    %v1117 = vmul.f32 %v1115, %v1116
    %v1118 = vsub.f32 1.0, %v1117
    %v1119 = vmul.f32 %v1116, %v1118
    %v1120 = vadd.f32 %v1116, %v1119
    %vm1121 = vweird.f32 %v1115
    %vm1122 = vweird.f32 %v1116
    %vm1123 = vmor %vm1121, %vm1122
    %v1124 = vsel %vm1123, %v1116, %v1120
    %v1125 = vand.u32 2147483647, %v1115
    %vm1126 = vcmp.eq.f32.partialorder %v1125, 8.507059e+37
    %v1127 = vand.u32 %v1115, 2147483648
    %v1128 = vor.u32 1.1754944e-38, %v1127
    %v1129 = vsel %vm1126, %v1128, %v1124
    %v1130 = vmul.f32 1.0, %v1129
    %v1132 = vrot.slane %v1111, 2
    %v1134 = vxor.u32 %v1132, 2147483648
    %v1135 = vmul.f32 %v1134, 1.442695
    %v1136 = vpow.pop %v1135
    %v1137 = vadd.f32 %v1136, 1.0
    %v1138 = vrcp.pop %v1137
    %v1139 = vmul.f32 %v1137, %v1138
    %v1140 = vsub.f32 1.0, %v1139
    %v1141 = vmul.f32 %v1138, %v1140
    %v1142 = vadd.f32 %v1138, %v1141
    %vm1143 = vweird.f32 %v1137
    %vm1144 = vweird.f32 %v1138
    %vm1145 = vmor %vm1143, %vm1144
    %v1146 = vsel %vm1145, %v1138, %v1142
    %v1147 = vand.u32 2147483647, %v1137
    %vm1148 = vcmp.eq.f32.partialorder %v1147, 8.507059e+37
    %v1149 = vand.u32 %v1137, 2147483648
    %v1150 = vor.u32 1.1754944e-38, %v1149
    %v1151 = vsel %vm1148, %v1150, %v1146
    %v1152 = vmul.f32 1.0, %v1151
    %v1153 = vrot.slane %v1111, 4
    %v1155 = vtanh.pop %v1153
    %v1156 = vrot.slane %v1111, 6
    %v1158 = vxor.u32 %v1156, 2147483648
    %v1159 = vmul.f32 %v1158, 1.442695
    %v1160 = vpow.pop %v1159
    %v1161 = vadd.f32 %v1160, 1.0
    %v1162 = vrcp.pop %v1161
    %v1163 = vmul.f32 %v1161, %v1162
    %v1164 = vsub.f32 1.0, %v1163
    %v1165 = vmul.f32 %v1162, %v1164
    %v1166 = vadd.f32 %v1162, %v1165
    %vm1167 = vweird.f32 %v1161
    %vm1168 = vweird.f32 %v1162
    %vm1169 = vmor %vm1167, %vm1168
    %v1170 = vsel %vm1169, %v1162, %v1166
    %v1171 = vand.u32 2147483647, %v1161
    %vm1172 = vcmp.eq.f32.partialorder %v1171, 8.507059e+37
    %v1173 = vand.u32 %v1161, 2147483648
    %v1174 = vor.u32 1.1754944e-38, %v1173
    %v1175 = vsel %vm1172, %v1174, %v1170
    %v1176 = vmul.f32 1.0, %v1175
    %v1177 = vmul.f32 %v1152, %v1043
    %v1178 = vmul.f32 %v1130, %v1155
    %v1179 = vadd.f32 %v1177, %v1178
    %v1180 = vtanh.pop %v1179
    %v1181 = vmul.f32 %v1176, %v1180
    %v1182 = vld [vmem:[%s334] sm:$0xff]
    %v1183 = vpack.c.bf16 %v1181, %v1181
    %1184 = vmatpush.bf16.msra.mxu0 %v876
    %1185 = vmatpush.bf16.msra.mxu0 %v872
    %1186 = vmatpush.bf16.msra.mxu0 %v868
    %1187 = vmatpush.bf16.msra.mxu0 %v864
    %1188 = vmatpush.bf16.msra.mxu0 %v860
    %1189 = vmatpush.bf16.msra.mxu0 %v856
    %1190 = vmatpush.bf16.msra.mxu0 %v852
    %1191 = vmatpush.bf16.msra.mxu0 %v848
    %1192 = vmatmul.bf16.gmra.mxu0 %v1183
    %v1193 = vpop.f32.mrf.mxu0
    %v1194 = vadd.f32 0.0, %v1193
    %v1195 = vpop.f32.mrf.mxu0
    %1196 = vdwg.mxu0
    %1197 = vmatpush.bf16.msra.mxu0 %v877
    %1198 = vmatpush.bf16.msra.mxu0 %v873
    %1199 = vmatpush.bf16.msra.mxu0 %v869
    %1200 = vmatpush.bf16.msra.mxu0 %v865
    %1201 = vmatpush.bf16.msra.mxu0 %v861
    %1202 = vmatpush.bf16.msra.mxu0 %v857
    %1203 = vmatpush.bf16.msra.mxu0 %v853
    %1204 = vmatpush.bf16.msra.mxu0 %v849
    %1205 = vmatmul.bf16.gmra.mxu0 %v1183
    %v1206 = vpop.f32.mrf.mxu0
    %v1207 = vadd.f32 0.0, %v1206
    %v1208 = vpop.f32.mrf.mxu0
    %1209 = vdwg.mxu0
    %1210 = vmatpush.bf16.msra.mxu0 %v878
    %1211 = vmatpush.bf16.msra.mxu0 %v874
    %1212 = vmatpush.bf16.msra.mxu0 %v870
    %1213 = vmatpush.bf16.msra.mxu0 %v866
    %1214 = vmatpush.bf16.msra.mxu0 %v862
    %1215 = vmatpush.bf16.msra.mxu0 %v858
    %1216 = vmatpush.bf16.msra.mxu0 %v854
    %1217 = vmatpush.bf16.msra.mxu0 %v850
    %1218 = vmatmul.bf16.gmra.mxu0 %v1183
    %v1219 = vpop.f32.mrf.mxu0
    %v1220 = vadd.f32 0.0, %v1219
    %v1221 = vpop.f32.mrf.mxu0
    %1222 = vdwg.mxu0
    %1223 = vmatpush.bf16.msra.mxu0 %v879
    %1224 = vmatpush.bf16.msra.mxu0 %v875
    %1225 = vmatpush.bf16.msra.mxu0 %v871
    %1226 = vmatpush.bf16.msra.mxu0 %v867
    %1227 = vmatpush.bf16.msra.mxu0 %v863
    %1228 = vmatpush.bf16.msra.mxu0 %v859
    %1229 = vmatpush.bf16.msra.mxu0 %v855
    %1230 = vmatpush.bf16.msra.mxu0 %v851
    %1231 = vmatmul.bf16.gmra.mxu0 %v1183
    %v1232 = vpop.f32.mrf.mxu0
    %v1233 = vadd.f32 0.0, %v1232
    %v1234 = vpop.f32.mrf.mxu0
    %1235 = vdwg.mxu0
    %v1240 = vrot.slane %v1207, 6
    %v1241 = vrot.slane %v1220, 4
    %v1242 = vrot.slane %v1233, 2
    %v1243 = vsel %vm95, %v1194, %v1240
    %v1244 = vsel %vm164, %v1241, %v1242
    %v1245 = vsel %vm166, %v1243, %v1244
    %v1247 = vadd.f32 %v1182, %v1245
    %v1248 = vxor.u32 %v1247, 2147483648
    %v1249 = vmul.f32 %v1248, 1.442695
    %v1250 = vpow.pop %v1249
    %v1251 = vadd.f32 %v1250, 1.0
    %v1252 = vrcp.pop %v1251
    %v1253 = vmul.f32 %v1251, %v1252
    %v1254 = vsub.f32 1.0, %v1253
    %v1255 = vmul.f32 %v1252, %v1254
    %v1256 = vadd.f32 %v1252, %v1255
    %vm1257 = vweird.f32 %v1251
    %vm1258 = vweird.f32 %v1252
    %vm1259 = vmor %vm1257, %vm1258
    %v1260 = vsel %vm1259, %v1252, %v1256
    %v1261 = vand.u32 2147483647, %v1251
    %vm1262 = vcmp.eq.f32.partialorder %v1261, 8.507059e+37
    %v1263 = vand.u32 %v1251, 2147483648
    %v1264 = vor.u32 1.1754944e-38, %v1263
    %v1265 = vsel %vm1262, %v1264, %v1260
    %v1266 = vmul.f32 1.0, %v1265
    %v1268 = vrot.slane %v1247, 2
    %v1270 = vxor.u32 %v1268, 2147483648
    %v1271 = vmul.f32 %v1270, 1.442695
    %v1272 = vpow.pop %v1271
    %v1273 = vadd.f32 %v1272, 1.0
    %v1274 = vrcp.pop %v1273
    %v1275 = vmul.f32 %v1273, %v1274
    %v1276 = vsub.f32 1.0, %v1275
    %v1277 = vmul.f32 %v1274, %v1276
    %v1278 = vadd.f32 %v1274, %v1277
    %vm1279 = vweird.f32 %v1273
    %vm1280 = vweird.f32 %v1274
    %vm1281 = vmor %vm1279, %vm1280
    %v1282 = vsel %vm1281, %v1274, %v1278
    %v1283 = vand.u32 2147483647, %v1273
    %vm1284 = vcmp.eq.f32.partialorder %v1283, 8.507059e+37
    %v1285 = vand.u32 %v1273, 2147483648
    %v1286 = vor.u32 1.1754944e-38, %v1285
    %v1287 = vsel %vm1284, %v1286, %v1282
    %v1288 = vmul.f32 1.0, %v1287
    %v1289 = vrot.slane %v1247, 4
    %v1291 = vtanh.pop %v1289
    %v1292 = vrot.slane %v1247, 6
    %v1294 = vxor.u32 %v1292, 2147483648
    %v1295 = vmul.f32 %v1294, 1.442695
    %v1296 = vpow.pop %v1295
    %v1297 = vadd.f32 %v1296, 1.0
    %v1298 = vrcp.pop %v1297
    %v1299 = vmul.f32 %v1297, %v1298
    %v1300 = vsub.f32 1.0, %v1299
    %v1301 = vmul.f32 %v1298, %v1300
    %v1302 = vadd.f32 %v1298, %v1301
    %vm1303 = vweird.f32 %v1297
    %vm1304 = vweird.f32 %v1298
    %vm1305 = vmor %vm1303, %vm1304
    %v1306 = vsel %vm1305, %v1298, %v1302
    %v1307 = vand.u32 2147483647, %v1297
    %vm1308 = vcmp.eq.f32.partialorder %v1307, 8.507059e+37
    %v1309 = vand.u32 %v1297, 2147483648
    %v1310 = vor.u32 1.1754944e-38, %v1309
    %v1311 = vsel %vm1308, %v1310, %v1306
    %v1312 = vmul.f32 1.0, %v1311
    %v1313 = vmul.f32 %v1288, %v1179
    %v1314 = vmul.f32 %v1266, %v1291
    %v1315 = vadd.f32 %v1313, %v1314
    %v1316 = vtanh.pop %v1315
    %v1317 = vmul.f32 %v1312, %v1316
    %v1318 = vld [vmem:[%s417] sm:$0xff]
    %v1319 = vpack.c.bf16 %v1317, %v1317
    %1320 = vmatpush.bf16.msra.mxu0 %v876
    %1321 = vmatpush.bf16.msra.mxu0 %v872
    %1322 = vmatpush.bf16.msra.mxu0 %v868
    %1323 = vmatpush.bf16.msra.mxu0 %v864
    %1324 = vmatpush.bf16.msra.mxu0 %v860
    %1325 = vmatpush.bf16.msra.mxu0 %v856
    %1326 = vmatpush.bf16.msra.mxu0 %v852
    %1327 = vmatpush.bf16.msra.mxu0 %v848
    %1328 = vmatmul.bf16.gmra.mxu0 %v1319
    %v1329 = vpop.f32.mrf.mxu0
    %v1330 = vadd.f32 0.0, %v1329
    %v1331 = vpop.f32.mrf.mxu0
    %1332 = vdwg.mxu0
    %1333 = vmatpush.bf16.msra.mxu0 %v877
    %1334 = vmatpush.bf16.msra.mxu0 %v873
    %1335 = vmatpush.bf16.msra.mxu0 %v869
    %1336 = vmatpush.bf16.msra.mxu0 %v865
    %1337 = vmatpush.bf16.msra.mxu0 %v861
    %1338 = vmatpush.bf16.msra.mxu0 %v857
    %1339 = vmatpush.bf16.msra.mxu0 %v853
    %1340 = vmatpush.bf16.msra.mxu0 %v849
    %1341 = vmatmul.bf16.gmra.mxu0 %v1319
    %v1342 = vpop.f32.mrf.mxu0
    %v1343 = vadd.f32 0.0, %v1342
    %v1344 = vpop.f32.mrf.mxu0
    %1345 = vdwg.mxu0
    %1346 = vmatpush.bf16.msra.mxu0 %v878
    %1347 = vmatpush.bf16.msra.mxu0 %v874
    %1348 = vmatpush.bf16.msra.mxu0 %v870
    %1349 = vmatpush.bf16.msra.mxu0 %v866
    %1350 = vmatpush.bf16.msra.mxu0 %v862
    %1351 = vmatpush.bf16.msra.mxu0 %v858
    %1352 = vmatpush.bf16.msra.mxu0 %v854
    %1353 = vmatpush.bf16.msra.mxu0 %v850
    %1354 = vmatmul.bf16.gmra.mxu0 %v1319
    %v1355 = vpop.f32.mrf.mxu0
    %v1356 = vadd.f32 0.0, %v1355
    %v1357 = vpop.f32.mrf.mxu0
    %1358 = vdwg.mxu0
    %1359 = vmatpush.bf16.msra.mxu0 %v879
    %1360 = vmatpush.bf16.msra.mxu0 %v875
    %1361 = vmatpush.bf16.msra.mxu0 %v871
    %1362 = vmatpush.bf16.msra.mxu0 %v867
    %1363 = vmatpush.bf16.msra.mxu0 %v863
    %1364 = vmatpush.bf16.msra.mxu0 %v859
    %1365 = vmatpush.bf16.msra.mxu0 %v855
    %1366 = vmatpush.bf16.msra.mxu0 %v851
    %1367 = vmatmul.bf16.gmra.mxu0 %v1319
    %v1368 = vpop.f32.mrf.mxu0
    %v1369 = vadd.f32 0.0, %v1368
    %v1370 = vpop.f32.mrf.mxu0
    %1371 = vdwg.mxu0
    %v1376 = vrot.slane %v1343, 6
    %v1377 = vrot.slane %v1356, 4
    %v1378 = vrot.slane %v1369, 2
    %v1379 = vsel %vm95, %v1330, %v1376
    %v1380 = vsel %vm164, %v1377, %v1378
    %v1381 = vsel %vm166, %v1379, %v1380
    %v1383 = vadd.f32 %v1318, %v1381
    %v1384 = vxor.u32 %v1383, 2147483648
    %v1385 = vmul.f32 %v1384, 1.442695
    %v1386 = vpow.pop %v1385
    %v1387 = vadd.f32 %v1386, 1.0
    %v1388 = vrcp.pop %v1387
    %v1389 = vmul.f32 %v1387, %v1388
    %v1390 = vsub.f32 1.0, %v1389
    %v1391 = vmul.f32 %v1388, %v1390
    %v1392 = vadd.f32 %v1388, %v1391
    %vm1393 = vweird.f32 %v1387
    %vm1394 = vweird.f32 %v1388
    %vm1395 = vmor %vm1393, %vm1394
    %v1396 = vsel %vm1395, %v1388, %v1392
    %v1397 = vand.u32 2147483647, %v1387
    %vm1398 = vcmp.eq.f32.partialorder %v1397, 8.507059e+37
    %v1399 = vand.u32 %v1387, 2147483648
    %v1400 = vor.u32 1.1754944e-38, %v1399
    %v1401 = vsel %vm1398, %v1400, %v1396
    %v1402 = vmul.f32 1.0, %v1401
    %v1404 = vrot.slane %v1383, 2
    %v1406 = vxor.u32 %v1404, 2147483648
    %v1407 = vmul.f32 %v1406, 1.442695
    %v1408 = vpow.pop %v1407
    %v1409 = vadd.f32 %v1408, 1.0
    %v1410 = vrcp.pop %v1409
    %v1411 = vmul.f32 %v1409, %v1410
    %v1412 = vsub.f32 1.0, %v1411
    %v1413 = vmul.f32 %v1410, %v1412
    %v1414 = vadd.f32 %v1410, %v1413
    %vm1415 = vweird.f32 %v1409
    %vm1416 = vweird.f32 %v1410
    %vm1417 = vmor %vm1415, %vm1416
    %v1418 = vsel %vm1417, %v1410, %v1414
    %v1419 = vand.u32 2147483647, %v1409
    %vm1420 = vcmp.eq.f32.partialorder %v1419, 8.507059e+37
    %v1421 = vand.u32 %v1409, 2147483648
    %v1422 = vor.u32 1.1754944e-38, %v1421
    %v1423 = vsel %vm1420, %v1422, %v1418
    %v1424 = vmul.f32 1.0, %v1423
    %v1425 = vrot.slane %v1383, 4
    %v1427 = vtanh.pop %v1425
    %v1428 = vrot.slane %v1383, 6
    %v1430 = vxor.u32 %v1428, 2147483648
    %v1431 = vmul.f32 %v1430, 1.442695
    %v1432 = vpow.pop %v1431
    %v1433 = vadd.f32 %v1432, 1.0
    %v1434 = vrcp.pop %v1433
    %v1435 = vmul.f32 %v1433, %v1434
    %v1436 = vsub.f32 1.0, %v1435
    %v1437 = vmul.f32 %v1434, %v1436
    %v1438 = vadd.f32 %v1434, %v1437
    %vm1439 = vweird.f32 %v1433
    %vm1440 = vweird.f32 %v1434
    %vm1441 = vmor %vm1439, %vm1440
    %v1442 = vsel %vm1441, %v1434, %v1438
    %v1443 = vand.u32 2147483647, %v1433
    %vm1444 = vcmp.eq.f32.partialorder %v1443, 8.507059e+37
    %v1445 = vand.u32 %v1433, 2147483648
    %v1446 = vor.u32 1.1754944e-38, %v1445
    %v1447 = vsel %vm1444, %v1446, %v1442
    %v1448 = vmul.f32 1.0, %v1447
    %v1449 = vmul.f32 %v1424, %v1315
    %v1450 = vmul.f32 %v1402, %v1427
    %v1451 = vadd.f32 %v1449, %v1450
    %v1452 = vtanh.pop %v1451
    %v1453 = vmul.f32 %v1448, %v1452
    %v1454 = vld [vmem:[%s500] sm:$0xff]
    %v1455 = vpack.c.bf16 %v1453, %v1453
    %1456 = vmatpush.bf16.msra.mxu0 %v876
    %1457 = vmatpush.bf16.msra.mxu0 %v872
    %1458 = vmatpush.bf16.msra.mxu0 %v868
    %1459 = vmatpush.bf16.msra.mxu0 %v864
    %1460 = vmatpush.bf16.msra.mxu0 %v860
    %1461 = vmatpush.bf16.msra.mxu0 %v856
    %1462 = vmatpush.bf16.msra.mxu0 %v852
    %1463 = vmatpush.bf16.msra.mxu0 %v848
    %1464 = vmatmul.bf16.gmra.mxu0 %v1455
    %v1465 = vpop.f32.mrf.mxu0
    %v1466 = vadd.f32 0.0, %v1465
    %v1467 = vpop.f32.mrf.mxu0
    %1468 = vdwg.mxu0
    %1469 = vmatpush.bf16.msra.mxu0 %v877
    %1470 = vmatpush.bf16.msra.mxu0 %v873
    %1471 = vmatpush.bf16.msra.mxu0 %v869
    %1472 = vmatpush.bf16.msra.mxu0 %v865
    %1473 = vmatpush.bf16.msra.mxu0 %v861
    %1474 = vmatpush.bf16.msra.mxu0 %v857
    %1475 = vmatpush.bf16.msra.mxu0 %v853
    %1476 = vmatpush.bf16.msra.mxu0 %v849
    %1477 = vmatmul.bf16.gmra.mxu0 %v1455
    %v1478 = vpop.f32.mrf.mxu0
    %v1479 = vadd.f32 0.0, %v1478
    %v1480 = vpop.f32.mrf.mxu0
    %1481 = vdwg.mxu0
    %1482 = vmatpush.bf16.msra.mxu0 %v878
    %1483 = vmatpush.bf16.msra.mxu0 %v874
    %1484 = vmatpush.bf16.msra.mxu0 %v870
    %1485 = vmatpush.bf16.msra.mxu0 %v866
    %1486 = vmatpush.bf16.msra.mxu0 %v862
    %1487 = vmatpush.bf16.msra.mxu0 %v858
    %1488 = vmatpush.bf16.msra.mxu0 %v854
    %1489 = vmatpush.bf16.msra.mxu0 %v850
    %1490 = vmatmul.bf16.gmra.mxu0 %v1455
    %v1491 = vpop.f32.mrf.mxu0
    %v1492 = vadd.f32 0.0, %v1491
    %v1493 = vpop.f32.mrf.mxu0
    %1494 = vdwg.mxu0
    %1495 = vmatpush.bf16.msra.mxu0 %v879
    %1496 = vmatpush.bf16.msra.mxu0 %v875
    %1497 = vmatpush.bf16.msra.mxu0 %v871
    %1498 = vmatpush.bf16.msra.mxu0 %v867
    %1499 = vmatpush.bf16.msra.mxu0 %v863
    %1500 = vmatpush.bf16.msra.mxu0 %v859
    %1501 = vmatpush.bf16.msra.mxu0 %v855
    %1502 = vmatpush.bf16.msra.mxu0 %v851
    %1503 = vmatmul.bf16.gmra.mxu0 %v1455
    %v1504 = vpop.f32.mrf.mxu0
    %v1505 = vadd.f32 0.0, %v1504
    %v1506 = vpop.f32.mrf.mxu0
    %1507 = vdwg.mxu0
    %v1512 = vrot.slane %v1479, 6
    %v1513 = vrot.slane %v1492, 4
    %v1514 = vrot.slane %v1505, 2
    %v1515 = vsel %vm95, %v1466, %v1512
    %v1516 = vsel %vm164, %v1513, %v1514
    %v1517 = vsel %vm166, %v1515, %v1516
    %v1519 = vadd.f32 %v1454, %v1517
    %v1520 = vxor.u32 %v1519, 2147483648
    %v1521 = vmul.f32 %v1520, 1.442695
    %v1522 = vpow.pop %v1521
    %v1523 = vadd.f32 %v1522, 1.0
    %v1524 = vrcp.pop %v1523
    %v1525 = vmul.f32 %v1523, %v1524
    %v1526 = vsub.f32 1.0, %v1525
    %v1527 = vmul.f32 %v1524, %v1526
    %v1528 = vadd.f32 %v1524, %v1527
    %vm1529 = vweird.f32 %v1523
    %vm1530 = vweird.f32 %v1524
    %vm1531 = vmor %vm1529, %vm1530
    %v1532 = vsel %vm1531, %v1524, %v1528
    %v1533 = vand.u32 2147483647, %v1523
    %vm1534 = vcmp.eq.f32.partialorder %v1533, 8.507059e+37
    %v1535 = vand.u32 %v1523, 2147483648
    %v1536 = vor.u32 1.1754944e-38, %v1535
    %v1537 = vsel %vm1534, %v1536, %v1532
    %v1538 = vmul.f32 1.0, %v1537
    %v1540 = vrot.slane %v1519, 2
    %v1542 = vxor.u32 %v1540, 2147483648
    %v1543 = vmul.f32 %v1542, 1.442695
    %v1544 = vpow.pop %v1543
    %v1545 = vadd.f32 %v1544, 1.0
    %v1546 = vrcp.pop %v1545
    %v1547 = vmul.f32 %v1545, %v1546
    %v1548 = vsub.f32 1.0, %v1547
    %v1549 = vmul.f32 %v1546, %v1548
    %v1550 = vadd.f32 %v1546, %v1549
    %vm1551 = vweird.f32 %v1545
    %vm1552 = vweird.f32 %v1546
    %vm1553 = vmor %vm1551, %vm1552
    %v1554 = vsel %vm1553, %v1546, %v1550
    %v1555 = vand.u32 2147483647, %v1545
    %vm1556 = vcmp.eq.f32.partialorder %v1555, 8.507059e+37
    %v1557 = vand.u32 %v1545, 2147483648
    %v1558 = vor.u32 1.1754944e-38, %v1557
    %v1559 = vsel %vm1556, %v1558, %v1554
    %v1560 = vmul.f32 1.0, %v1559
    %v1561 = vrot.slane %v1519, 4
    %v1563 = vtanh.pop %v1561
    %v1564 = vrot.slane %v1519, 6
    %v1566 = vxor.u32 %v1564, 2147483648
    %v1567 = vmul.f32 %v1566, 1.442695
    %v1568 = vpow.pop %v1567
    %v1569 = vadd.f32 %v1568, 1.0
    %v1570 = vrcp.pop %v1569
    %v1571 = vmul.f32 %v1569, %v1570
    %v1572 = vsub.f32 1.0, %v1571
    %v1573 = vmul.f32 %v1570, %v1572
    %v1574 = vadd.f32 %v1570, %v1573
    %vm1575 = vweird.f32 %v1569
    %vm1576 = vweird.f32 %v1570
    %vm1577 = vmor %vm1575, %vm1576
    %v1578 = vsel %vm1577, %v1570, %v1574
    %v1579 = vand.u32 2147483647, %v1569
    %vm1580 = vcmp.eq.f32.partialorder %v1579, 8.507059e+37
    %v1581 = vand.u32 %v1569, 2147483648
    %v1582 = vor.u32 1.1754944e-38, %v1581
    %v1583 = vsel %vm1580, %v1582, %v1578
    %v1584 = vmul.f32 1.0, %v1583
    %v1585 = vmul.f32 %v1560, %v1451
    %v1586 = vmul.f32 %v1538, %v1563
    %v1587 = vadd.f32 %v1585, %v1586
    %v1588 = vtanh.pop %v1587
    %v1589 = vmul.f32 %v1584, %v1588
    %v1590 = vld [vmem:[%s583] sm:$0xff]
    %v1591 = vpack.c.bf16 %v1589, %v1589
    %1592 = vmatpush.bf16.msra.mxu0 %v876
    %1593 = vmatpush.bf16.msra.mxu0 %v872
    %1594 = vmatpush.bf16.msra.mxu0 %v868
    %1595 = vmatpush.bf16.msra.mxu0 %v864
    %1596 = vmatpush.bf16.msra.mxu0 %v860
    %1597 = vmatpush.bf16.msra.mxu0 %v856
    %1598 = vmatpush.bf16.msra.mxu0 %v852
    %1599 = vmatpush.bf16.msra.mxu0 %v848
    %1600 = vmatmul.bf16.gmra.mxu0 %v1591
    %v1601 = vpop.f32.mrf.mxu0
    %v1602 = vadd.f32 0.0, %v1601
    %v1603 = vpop.f32.mrf.mxu0
    %1604 = vdwg.mxu0
    %1605 = vmatpush.bf16.msra.mxu0 %v877
    %1606 = vmatpush.bf16.msra.mxu0 %v873
    %1607 = vmatpush.bf16.msra.mxu0 %v869
    %1608 = vmatpush.bf16.msra.mxu0 %v865
    %1609 = vmatpush.bf16.msra.mxu0 %v861
    %1610 = vmatpush.bf16.msra.mxu0 %v857
    %1611 = vmatpush.bf16.msra.mxu0 %v853
    %1612 = vmatpush.bf16.msra.mxu0 %v849
    %1613 = vmatmul.bf16.gmra.mxu0 %v1591
    %v1614 = vpop.f32.mrf.mxu0
    %v1615 = vadd.f32 0.0, %v1614
    %v1616 = vpop.f32.mrf.mxu0
    %1617 = vdwg.mxu0
    %1618 = vmatpush.bf16.msra.mxu0 %v878
    %1619 = vmatpush.bf16.msra.mxu0 %v874
    %1620 = vmatpush.bf16.msra.mxu0 %v870
    %1621 = vmatpush.bf16.msra.mxu0 %v866
    %1622 = vmatpush.bf16.msra.mxu0 %v862
    %1623 = vmatpush.bf16.msra.mxu0 %v858
    %1624 = vmatpush.bf16.msra.mxu0 %v854
    %1625 = vmatpush.bf16.msra.mxu0 %v850
    %1626 = vmatmul.bf16.gmra.mxu0 %v1591
    %v1627 = vpop.f32.mrf.mxu0
    %v1628 = vadd.f32 0.0, %v1627
    %v1629 = vpop.f32.mrf.mxu0
    %1630 = vdwg.mxu0
    %1631 = vmatpush.bf16.msra.mxu0 %v879
    %1632 = vmatpush.bf16.msra.mxu0 %v875
    %1633 = vmatpush.bf16.msra.mxu0 %v871
    %1634 = vmatpush.bf16.msra.mxu0 %v867
    %1635 = vmatpush.bf16.msra.mxu0 %v863
    %1636 = vmatpush.bf16.msra.mxu0 %v859
    %1637 = vmatpush.bf16.msra.mxu0 %v855
    %1638 = vmatpush.bf16.msra.mxu0 %v851
    %1639 = vmatmul.bf16.gmra.mxu0 %v1591
    %v1640 = vpop.f32.mrf.mxu0
    %v1641 = vadd.f32 0.0, %v1640
    %v1642 = vpop.f32.mrf.mxu0
    %1643 = vdwg.mxu0
    %v1648 = vrot.slane %v1615, 6
    %v1649 = vrot.slane %v1628, 4
    %v1650 = vrot.slane %v1641, 2
    %v1651 = vsel %vm95, %v1602, %v1648
    %v1652 = vsel %vm164, %v1649, %v1650
    %v1653 = vsel %vm166, %v1651, %v1652
    %v1655 = vadd.f32 %v1590, %v1653
    %v1656 = vxor.u32 %v1655, 2147483648
    %v1657 = vmul.f32 %v1656, 1.442695
    %v1658 = vpow.pop %v1657
    %v1659 = vadd.f32 %v1658, 1.0
    %v1660 = vrcp.pop %v1659
    %v1661 = vmul.f32 %v1659, %v1660
    %v1662 = vsub.f32 1.0, %v1661
    %v1663 = vmul.f32 %v1660, %v1662
    %v1664 = vadd.f32 %v1660, %v1663
    %vm1665 = vweird.f32 %v1659
    %vm1666 = vweird.f32 %v1660
    %vm1667 = vmor %vm1665, %vm1666
    %v1668 = vsel %vm1667, %v1660, %v1664
    %v1669 = vand.u32 2147483647, %v1659
    %vm1670 = vcmp.eq.f32.partialorder %v1669, 8.507059e+37
    %v1671 = vand.u32 %v1659, 2147483648
    %v1672 = vor.u32 1.1754944e-38, %v1671
    %v1673 = vsel %vm1670, %v1672, %v1668
    %v1674 = vmul.f32 1.0, %v1673
    %v1676 = vrot.slane %v1655, 2
    %v1678 = vxor.u32 %v1676, 2147483648
    %v1679 = vmul.f32 %v1678, 1.442695
    %v1680 = vpow.pop %v1679
    %v1681 = vadd.f32 %v1680, 1.0
    %v1682 = vrcp.pop %v1681
    %v1683 = vmul.f32 %v1681, %v1682
    %v1684 = vsub.f32 1.0, %v1683
    %v1685 = vmul.f32 %v1682, %v1684
    %v1686 = vadd.f32 %v1682, %v1685
    %vm1687 = vweird.f32 %v1681
    %vm1688 = vweird.f32 %v1682
    %vm1689 = vmor %vm1687, %vm1688
    %v1690 = vsel %vm1689, %v1682, %v1686
    %v1691 = vand.u32 2147483647, %v1681
    %vm1692 = vcmp.eq.f32.partialorder %v1691, 8.507059e+37
    %v1693 = vand.u32 %v1681, 2147483648
    %v1694 = vor.u32 1.1754944e-38, %v1693
    %v1695 = vsel %vm1692, %v1694, %v1690
    %v1696 = vmul.f32 1.0, %v1695
    %v1697 = vrot.slane %v1655, 4
    %v1699 = vtanh.pop %v1697
    %v1700 = vrot.slane %v1655, 6
    %v1702 = vxor.u32 %v1700, 2147483648
    %v1703 = vmul.f32 %v1702, 1.442695
    %v1704 = vpow.pop %v1703
    %v1705 = vadd.f32 %v1704, 1.0
    %v1706 = vrcp.pop %v1705
    %v1707 = vmul.f32 %v1705, %v1706
    %v1708 = vsub.f32 1.0, %v1707
    %v1709 = vmul.f32 %v1706, %v1708
    %v1710 = vadd.f32 %v1706, %v1709
    %vm1711 = vweird.f32 %v1705
    %vm1712 = vweird.f32 %v1706
    %vm1713 = vmor %vm1711, %vm1712
    %v1714 = vsel %vm1713, %v1706, %v1710
    %v1715 = vand.u32 2147483647, %v1705
    %vm1716 = vcmp.eq.f32.partialorder %v1715, 8.507059e+37
    %v1717 = vand.u32 %v1705, 2147483648
    %v1718 = vor.u32 1.1754944e-38, %v1717
    %v1719 = vsel %vm1716, %v1718, %v1714
    %v1720 = vmul.f32 1.0, %v1719
    %v1721 = vmul.f32 %v1696, %v1587
    %v1722 = vmul.f32 %v1674, %v1699
    %v1723 = vadd.f32 %v1721, %v1722
    %v1724 = vtanh.pop %v1723
    %v1725 = vmul.f32 %v1720, %v1724
    %v1726 = vld [vmem:[%s666] sm:$0xff]
    %v1727 = vpack.c.bf16 %v1725, %v1725
    %1728 = vmatpush.bf16.msra.mxu0 %v876
    %1729 = vmatpush.bf16.msra.mxu0 %v872
    %1730 = vmatpush.bf16.msra.mxu0 %v868
    %1731 = vmatpush.bf16.msra.mxu0 %v864
    %1732 = vmatpush.bf16.msra.mxu0 %v860
    %1733 = vmatpush.bf16.msra.mxu0 %v856
    %1734 = vmatpush.bf16.msra.mxu0 %v852
    %1735 = vmatpush.bf16.msra.mxu0 %v848
    %1736 = vmatmul.bf16.gmra.mxu0 %v1727
    %v1737 = vpop.f32.mrf.mxu0
    %v1738 = vadd.f32 0.0, %v1737
    %v1739 = vpop.f32.mrf.mxu0
    %1740 = vdwg.mxu0
    %1741 = vmatpush.bf16.msra.mxu0 %v877
    %1742 = vmatpush.bf16.msra.mxu0 %v873
    %1743 = vmatpush.bf16.msra.mxu0 %v869
    %1744 = vmatpush.bf16.msra.mxu0 %v865
    %1745 = vmatpush.bf16.msra.mxu0 %v861
    %1746 = vmatpush.bf16.msra.mxu0 %v857
    %1747 = vmatpush.bf16.msra.mxu0 %v853
    %1748 = vmatpush.bf16.msra.mxu0 %v849
    %1749 = vmatmul.bf16.gmra.mxu0 %v1727
    %v1750 = vpop.f32.mrf.mxu0
    %v1751 = vadd.f32 0.0, %v1750
    %v1752 = vpop.f32.mrf.mxu0
    %1753 = vdwg.mxu0
    %1754 = vmatpush.bf16.msra.mxu0 %v878
    %1755 = vmatpush.bf16.msra.mxu0 %v874
    %1756 = vmatpush.bf16.msra.mxu0 %v870
    %1757 = vmatpush.bf16.msra.mxu0 %v866
    %1758 = vmatpush.bf16.msra.mxu0 %v862
    %1759 = vmatpush.bf16.msra.mxu0 %v858
    %1760 = vmatpush.bf16.msra.mxu0 %v854
    %1761 = vmatpush.bf16.msra.mxu0 %v850
    %1762 = vmatmul.bf16.gmra.mxu0 %v1727
    %v1763 = vpop.f32.mrf.mxu0
    %v1764 = vadd.f32 0.0, %v1763
    %v1765 = vpop.f32.mrf.mxu0
    %1766 = vdwg.mxu0
    %1767 = vmatpush.bf16.msra.mxu0 %v879
    %1768 = vmatpush.bf16.msra.mxu0 %v875
    %1769 = vmatpush.bf16.msra.mxu0 %v871
    %1770 = vmatpush.bf16.msra.mxu0 %v867
    %1771 = vmatpush.bf16.msra.mxu0 %v863
    %1772 = vmatpush.bf16.msra.mxu0 %v859
    %1773 = vmatpush.bf16.msra.mxu0 %v855
    %1774 = vmatpush.bf16.msra.mxu0 %v851
    %1775 = vmatmul.bf16.gmra.mxu0 %v1727
    %v1776 = vpop.f32.mrf.mxu0
    %v1777 = vadd.f32 0.0, %v1776
    %v1778 = vpop.f32.mrf.mxu0
    %1779 = vdwg.mxu0
    %v1784 = vrot.slane %v1751, 6
    %v1785 = vrot.slane %v1764, 4
    %v1786 = vrot.slane %v1777, 2
    %v1787 = vsel %vm95, %v1738, %v1784
    %v1788 = vsel %vm164, %v1785, %v1786
    %v1789 = vsel %vm166, %v1787, %v1788
    %v1791 = vadd.f32 %v1726, %v1789
    %v1792 = vxor.u32 %v1791, 2147483648
    %v1793 = vmul.f32 %v1792, 1.442695
    %v1794 = vpow.pop %v1793
    %v1795 = vadd.f32 %v1794, 1.0
    %v1796 = vrcp.pop %v1795
    %v1797 = vmul.f32 %v1795, %v1796
    %v1798 = vsub.f32 1.0, %v1797
    %v1799 = vmul.f32 %v1796, %v1798
    %v1800 = vadd.f32 %v1796, %v1799
    %vm1801 = vweird.f32 %v1795
    %vm1802 = vweird.f32 %v1796
    %vm1803 = vmor %vm1801, %vm1802
    %v1804 = vsel %vm1803, %v1796, %v1800
    %v1805 = vand.u32 2147483647, %v1795
    %vm1806 = vcmp.eq.f32.partialorder %v1805, 8.507059e+37
    %v1807 = vand.u32 %v1795, 2147483648
    %v1808 = vor.u32 1.1754944e-38, %v1807
    %v1809 = vsel %vm1806, %v1808, %v1804
    %v1810 = vmul.f32 1.0, %v1809
    %v1812 = vrot.slane %v1791, 2
    %v1814 = vxor.u32 %v1812, 2147483648
    %v1815 = vmul.f32 %v1814, 1.442695
    %v1816 = vpow.pop %v1815
    %v1817 = vadd.f32 %v1816, 1.0
    %v1818 = vrcp.pop %v1817
    %v1819 = vmul.f32 %v1817, %v1818
    %v1820 = vsub.f32 1.0, %v1819
    %v1821 = vmul.f32 %v1818, %v1820
    %v1822 = vadd.f32 %v1818, %v1821
    %vm1823 = vweird.f32 %v1817
    %vm1824 = vweird.f32 %v1818
    %vm1825 = vmor %vm1823, %vm1824
    %v1826 = vsel %vm1825, %v1818, %v1822
    %v1827 = vand.u32 2147483647, %v1817
    %vm1828 = vcmp.eq.f32.partialorder %v1827, 8.507059e+37
    %v1829 = vand.u32 %v1817, 2147483648
    %v1830 = vor.u32 1.1754944e-38, %v1829
    %v1831 = vsel %vm1828, %v1830, %v1826
    %v1832 = vmul.f32 1.0, %v1831
    %v1833 = vrot.slane %v1791, 4
    %v1835 = vtanh.pop %v1833
    %v1836 = vrot.slane %v1791, 6
    %v1838 = vxor.u32 %v1836, 2147483648
    %v1839 = vmul.f32 %v1838, 1.442695
    %v1840 = vpow.pop %v1839
    %v1841 = vadd.f32 %v1840, 1.0
    %v1842 = vrcp.pop %v1841
    %v1843 = vmul.f32 %v1841, %v1842
    %v1844 = vsub.f32 1.0, %v1843
    %v1845 = vmul.f32 %v1842, %v1844
    %v1846 = vadd.f32 %v1842, %v1845
    %vm1847 = vweird.f32 %v1841
    %vm1848 = vweird.f32 %v1842
    %vm1849 = vmor %vm1847, %vm1848
    %v1850 = vsel %vm1849, %v1842, %v1846
    %v1851 = vand.u32 2147483647, %v1841
    %vm1852 = vcmp.eq.f32.partialorder %v1851, 8.507059e+37
    %v1853 = vand.u32 %v1841, 2147483648
    %v1854 = vor.u32 1.1754944e-38, %v1853
    %v1855 = vsel %vm1852, %v1854, %v1850
    %v1856 = vmul.f32 1.0, %v1855
    %v1857 = vmul.f32 %v1832, %v1723
    %v1858 = vmul.f32 %v1810, %v1835
    %v1859 = vadd.f32 %v1857, %v1858
    %v1860 = vtanh.pop %v1859
    %v1861 = vmul.f32 %v1856, %v1860
    %v1862 = vld [vmem:[%s749] sm:$0xff]
    %v1863 = vpack.c.bf16 %v1861, %v1861
    %1864 = vmatpush.bf16.msra.mxu0 %v876
    %1865 = vmatpush.bf16.msra.mxu0 %v872
    %1866 = vmatpush.bf16.msra.mxu0 %v868
    %1867 = vmatpush.bf16.msra.mxu0 %v864
    %1868 = vmatpush.bf16.msra.mxu0 %v860
    %1869 = vmatpush.bf16.msra.mxu0 %v856
    %1870 = vmatpush.bf16.msra.mxu0 %v852
    %1871 = vmatpush.bf16.msra.mxu0 %v848
    %1872 = vmatmul.bf16.gmra.mxu0 %v1863
    %v1873 = vpop.f32.mrf.mxu0
    %v1874 = vadd.f32 0.0, %v1873
    %v1875 = vpop.f32.mrf.mxu0
    %1876 = vdwg.mxu0
    %1877 = vmatpush.bf16.msra.mxu0 %v877
    %1878 = vmatpush.bf16.msra.mxu0 %v873
    %1879 = vmatpush.bf16.msra.mxu0 %v869
    %1880 = vmatpush.bf16.msra.mxu0 %v865
    %1881 = vmatpush.bf16.msra.mxu0 %v861
    %1882 = vmatpush.bf16.msra.mxu0 %v857
    %1883 = vmatpush.bf16.msra.mxu0 %v853
    %1884 = vmatpush.bf16.msra.mxu0 %v849
    %1885 = vmatmul.bf16.gmra.mxu0 %v1863
    %v1886 = vpop.f32.mrf.mxu0
    %v1887 = vadd.f32 0.0, %v1886
    %v1888 = vpop.f32.mrf.mxu0
    %1889 = vdwg.mxu0
    %1890 = vmatpush.bf16.msra.mxu0 %v878
    %1891 = vmatpush.bf16.msra.mxu0 %v874
    %1892 = vmatpush.bf16.msra.mxu0 %v870
    %1893 = vmatpush.bf16.msra.mxu0 %v866
    %1894 = vmatpush.bf16.msra.mxu0 %v862
    %1895 = vmatpush.bf16.msra.mxu0 %v858
    %1896 = vmatpush.bf16.msra.mxu0 %v854
    %1897 = vmatpush.bf16.msra.mxu0 %v850
    %1898 = vmatmul.bf16.gmra.mxu0 %v1863
    %v1899 = vpop.f32.mrf.mxu0
    %v1900 = vadd.f32 0.0, %v1899
    %v1901 = vpop.f32.mrf.mxu0
    %1902 = vdwg.mxu0
    %1903 = vmatpush.bf16.msra.mxu0 %v879
    %1904 = vmatpush.bf16.msra.mxu0 %v875
    %1905 = vmatpush.bf16.msra.mxu0 %v871
    %1906 = vmatpush.bf16.msra.mxu0 %v867
    %1907 = vmatpush.bf16.msra.mxu0 %v863
    %1908 = vmatpush.bf16.msra.mxu0 %v859
    %1909 = vmatpush.bf16.msra.mxu0 %v855
    %1910 = vmatpush.bf16.msra.mxu0 %v851
    %1911 = vmatmul.bf16.gmra.mxu0 %v1863
    %v1912 = vpop.f32.mrf.mxu0
    %v1913 = vadd.f32 0.0, %v1912
    %v1914 = vpop.f32.mrf.mxu0
    %1915 = vdwg.mxu0
    %v1920 = vrot.slane %v1887, 6
    %v1921 = vrot.slane %v1900, 4
    %v1922 = vrot.slane %v1913, 2
    %v1923 = vsel %vm95, %v1874, %v1920
    %v1924 = vsel %vm164, %v1921, %v1922
    %v1925 = vsel %vm166, %v1923, %v1924
    %v1927 = vadd.f32 %v1862, %v1925
    %v1928 = vxor.u32 %v1927, 2147483648
    %v1929 = vmul.f32 %v1928, 1.442695
    %v1930 = vpow.pop %v1929
    %v1931 = vadd.f32 %v1930, 1.0
    %v1932 = vrcp.pop %v1931
    %v1933 = vmul.f32 %v1931, %v1932
    %v1934 = vsub.f32 1.0, %v1933
    %v1935 = vmul.f32 %v1932, %v1934
    %v1936 = vadd.f32 %v1932, %v1935
    %vm1937 = vweird.f32 %v1931
    %vm1938 = vweird.f32 %v1932
    %vm1939 = vmor %vm1937, %vm1938
    %v1940 = vsel %vm1939, %v1932, %v1936
    %v1941 = vand.u32 2147483647, %v1931
    %vm1942 = vcmp.eq.f32.partialorder %v1941, 8.507059e+37
    %v1943 = vand.u32 %v1931, 2147483648
    %v1944 = vor.u32 1.1754944e-38, %v1943
    %v1945 = vsel %vm1942, %v1944, %v1940
    %v1946 = vmul.f32 1.0, %v1945
    %v1948 = vrot.slane %v1927, 2
    %v1950 = vxor.u32 %v1948, 2147483648
    %v1951 = vmul.f32 %v1950, 1.442695
    %v1952 = vpow.pop %v1951
    %v1953 = vadd.f32 %v1952, 1.0
    %v1954 = vrcp.pop %v1953
    %v1955 = vmul.f32 %v1953, %v1954
    %v1956 = vsub.f32 1.0, %v1955
    %v1957 = vmul.f32 %v1954, %v1956
    %v1958 = vadd.f32 %v1954, %v1957
    %vm1959 = vweird.f32 %v1953
    %vm1960 = vweird.f32 %v1954
    %vm1961 = vmor %vm1959, %vm1960
    %v1962 = vsel %vm1961, %v1954, %v1958
    %v1963 = vand.u32 2147483647, %v1953
    %vm1964 = vcmp.eq.f32.partialorder %v1963, 8.507059e+37
    %v1965 = vand.u32 %v1953, 2147483648
    %v1966 = vor.u32 1.1754944e-38, %v1965
    %v1967 = vsel %vm1964, %v1966, %v1962
    %v1968 = vmul.f32 1.0, %v1967
    %v1969 = vrot.slane %v1927, 4
    %v1971 = vtanh.pop %v1969
    %v1972 = vrot.slane %v1927, 6
    %v1974 = vxor.u32 %v1972, 2147483648
    %v1975 = vmul.f32 %v1974, 1.442695
    %v1976 = vpow.pop %v1975
    %v1977 = vadd.f32 %v1976, 1.0
    %v1978 = vrcp.pop %v1977
    %v1979 = vmul.f32 %v1977, %v1978
    %v1980 = vsub.f32 1.0, %v1979
    %v1981 = vmul.f32 %v1978, %v1980
    %v1982 = vadd.f32 %v1978, %v1981
    %vm1983 = vweird.f32 %v1977
    %vm1984 = vweird.f32 %v1978
    %vm1985 = vmor %vm1983, %vm1984
    %v1986 = vsel %vm1985, %v1978, %v1982
    %v1987 = vand.u32 2147483647, %v1977
    %vm1988 = vcmp.eq.f32.partialorder %v1987, 8.507059e+37
    %v1989 = vand.u32 %v1977, 2147483648
    %v1990 = vor.u32 1.1754944e-38, %v1989
    %v1991 = vsel %vm1988, %v1990, %v1986
    %v1992 = vmul.f32 1.0, %v1991
    %v1993 = vmul.f32 %v1968, %v1859
    %v1994 = vmul.f32 %v1946, %v1971
    %v1995 = vadd.f32 %v1993, %v1994
    %v1996 = vtanh.pop %v1995
    %v1997 = vmul.f32 %v1992, %v1996
    %v1998 = vpack.c.bf16 %v1997, %v1997
    %v1999 = vld [vmem:[%s4] sm:$0xf]
    %v2000 = vld [vmem:[%s4 + $0x4] sm:$0xf]
    %v2001 = vld [vmem:[%s4 + $0x8] sm:$0xf]
    %v2002 = vld [vmem:[%s4 + $0xc] sm:$0xf]
    %v2003 = vld [vmem:[%s4 + $0x10] sm:$0xf]
    %v2004 = vld [vmem:[%s4 + $0x14] sm:$0xf]
    %v2005 = vld [vmem:[%s4 + $0x18] sm:$0xf]
    %v2006 = vld [vmem:[%s4 + $0x1c] sm:$0xf]
    %v2007 = vld [vmem:[%s4 + $0x20] sm:$0xf]
    %v2008 = vld [vmem:[%s4 + $0x24] sm:$0xf]
    %v2009 = vld [vmem:[%s4 + $0x28] sm:$0xf]
    %v2010 = vld [vmem:[%s4 + $0x2c] sm:$0xf]
    %v2011 = vld [vmem:[%s4 + $0x30] sm:$0xf]
    %v2012 = vld [vmem:[%s4 + $0x34] sm:$0xf]
    %v2013 = vld [vmem:[%s4 + $0x38] sm:$0xf]
    %v2014 = vld [vmem:[%s4 + $0x3c] sm:$0xf]
    %v2015 = vld [vmem:[%s5] sm:$0x1]
    %v2017 = vperm.slane %v2015, 0
    %v2035 = vunpack.c.l.b16 %v1999
    %v2036 = vunpack.c.l.b16 %v2000
    %v2037 = vunpack.c.l.b16 %v2001
    %v2038 = vunpack.c.l.b16 %v2002
    %v2039 = vunpack.c.l.b16 %v2003
    %v2040 = vunpack.c.l.b16 %v2004
    %v2041 = vunpack.c.l.b16 %v2005
    %v2042 = vunpack.c.l.b16 %v2006
    %v2043 = vunpack.c.l.b16 %v2007
    %v2044 = vunpack.c.l.b16 %v2008
    %v2045 = vunpack.c.l.b16 %v2009
    %v2046 = vunpack.c.l.b16 %v2010
    %v2047 = vunpack.c.l.b16 %v2011
    %v2048 = vunpack.c.l.b16 %v2012
    %v2049 = vunpack.c.l.b16 %v2013
    %v2050 = vunpack.c.l.b16 %v2014
    %v2051 = vpack.c.b16 %v2036, %v2035
    %v2052 = vpack.c.b16 %v2038, %v2037
    %v2053 = vpack.c.b16 %v2040, %v2039
    %v2054 = vpack.c.b16 %v2042, %v2041
    %v2055 = vpack.c.b16 %v2044, %v2043
    %v2056 = vpack.c.b16 %v2046, %v2045
    %v2057 = vpack.c.b16 %v2048, %v2047
    %v2058 = vpack.c.b16 %v2050, %v2049
    %2067 = vmatpush.bf16.msra.mxu0 %v2058
    %2068 = vmatpush.bf16.msra.mxu0 %v2057
    %2069 = vmatpush.bf16.msra.mxu0 %v2056
    %2070 = vmatpush.bf16.msra.mxu0 %v2055
    %2071 = vmatpush.bf16.msra.mxu0 %v2054
    %2072 = vmatpush.bf16.msra.mxu0 %v2053
    %2073 = vmatpush.bf16.msra.mxu0 %v2052
    %2074 = vmatpush.bf16.msra.mxu0 %v2051
    %2075 = vmatmul.bf16.gmra.mxu0 %v1998
    %v2076 = vpop.f32.mrf.mxu0
    %v2077 = vadd.f32 %v2017, %v2076
    %v2078 = vpop.f32.mrf.mxu0
    %2079 = vdwg.mxu0
    %vm2080 = vcmask 17408
    %v2081 = vsel %vm2080, %v2077, -inf
    %2082 = vmax.xlane.f32.xlu0 %v2081
    %v2083 = vpop.xlane.xlu0 %2082
    %v2084 = vsub.f32 %v2077, %v2083
    %v2085 = vmul.f32 %v2084, 1.442695
    %v2086 = vpow.pop %v2085
    %v2087 = vsel %vm2080, %v2086, 0.0
    %2088 = vadd.xlane.f32.xlu0 %v2087
    %v2089 = vpop.xlane.xlu0 %2088
    %v2090 = vrcp.pop %v2089
    %v2091 = vmul.f32 %v2089, %v2090
    %v2092 = vsub.f32 1.0, %v2091
    %v2093 = vmul.f32 %v2090, %v2092
    %v2094 = vadd.f32 %v2090, %v2093
    %vm2095 = vweird.f32 %v2089
    %vm2096 = vweird.f32 %v2090
    %vm2097 = vmor %vm2095, %vm2096
    %v2098 = vsel %vm2097, %v2090, %v2094
    %v2099 = vand.u32 2147483647, %v2089
    %vm2100 = vcmp.eq.f32.partialorder %v2099, 8.507059e+37
    %v2101 = vand.u32 %v2089, 2147483648
    %v2102 = vor.u32 1.1754944e-38, %v2101
    %v2103 = vsel %vm2100, %v2102, %v2098
    %v2104 = vmul.f32 %v2086, %v2103
    %2105 = vst.msk [vmem:[#allocation6] sm:$0x3] %vm2080, %v2104
    // Predicated region
    $region30: #{model_forward.1} parent=1 // pred_check
      _
    $region31: #{model_forward.1} parent=1 // pred_check_branch
      %2107 = sbr.rel (0) target = $region33
    $region32: #{model_forward.1} parent=1 // pred_region
      %2109 = vsyncadd [#allocation5], 0
      %s2111 = sshll.u32 [#allocation6], 4
      %s2112 = int_to_ptr.vmem [resolvable:$true] %s2111
      %s2113 = sshll.u32 %s6, 4
      %s2114 = int_to_ptr.hbm [resolvable:$true] %s2113
      %2116 = dma.vmem_to_hbm [thread:$0]  %s2112, 32, %s2114, [#allocation5]
    $region33: #{model_forward.1} parent=1 // pred_fallthru
      _
    // Predicated region
    $region34: #{model_forward.1} parent=1 // pred_check
      _
    $region35: #{model_forward.1} parent=1 // pred_check_branch
      %2118 = sbr.rel (0) target = $region37
    $region36: #{model_forward.1} parent=1 // pred_region
      %2120 = dma.done [#allocation5], 32
    $region37: #{model_forward.1} parent=1 // pred_fallthru
      _
    %2121 = vsyncpa [#allocation4], 1
    %2122 = vsyncpa [#allocation5], 1

</llo_original>
